<compile_context>
chip_gen: v6e
topology: v6e:2x2x1
jax: 0.10.0
libtpu: 0.0.40
codegen_flags: <defaults>
</compile_context>

<pallas_src>
import functools

import jax
import jax.numpy as jnp
from jax import lax
from jax.experimental import pallas as pl
from jax.experimental.pallas import tpu as pltpu

EPS = 1e-5          # PyTorch BatchNorm default eps (training mode -> batch stats)
LANES = 128         # student (64) || teacher (64) conv channels -> lane-dense
ROW_CAP = 2048      # rows per stem block: 2048 x 128 bf16 = 512 KiB (1 MiB dbl-buf)
VMEM_LIMIT = 32 << 20  # explicit (v5e scoped default is only 16 MiB)


def _round_up(x, m):
    return (x + m - 1) // m * m


# ----------------------------- Pallas kernels -----------------------------

def _stem_stats_kernel(y_ref, stat_ref):
    """Per-view channel sum / sum-of-squares, accumulated in-kernel.

    y_ref:    (1, nt, ts, 128) bf16 conv-output chunk
    stat_ref: (1, 2, 128)      f32  resident accumulator (row0=sum, row1=sumsq)
    """
    i = pl.program_id(1)
    s = pl.program_id(2)

    @pl.when(jnp.logical_and(i == 0, s == 0))
    def _():
        stat_ref[...] = jnp.zeros_like(stat_ref)

    y = y_ref[0].astype(jnp.float32).reshape(-1, LANES)       # [rows, 128]
    ssum = jnp.sum(y, axis=0, keepdims=True)                  # [1, 128]
    ssq = jnp.sum(y * y, axis=0, keepdims=True)               # [1, 128]
    stat_ref[...] += jnp.concatenate([ssum, ssq], axis=0)[None]


def _stem_pool_kernel(y_ref, mean_ref, invstd_ref, o_ref, *, inv_spp):
    """BN (global stats) + ReLU + global-average-pool, spatial axis tiled.

    y_ref:   (1, nt, ts, 128) bf16 conv-output chunk
    mean_ref / invstd_ref: (1, 1, 128) f32 per-view channel stats
    o_ref:   (1, nt, 1, 128) f32 pooled features, resident across the spp axis
    """
    s = pl.program_id(2)

    @pl.when(s == 0)
    def _():
        o_ref[...] = jnp.zeros_like(o_ref)

    y = y_ref[0].astype(jnp.float32)                          # (nt, ts, 128)
    yn = jnp.maximum((y - mean_ref[0]) * invstd_ref[0], 0.0)  # BN + ReLU
    pooled = jnp.sum(yn, axis=1) * inv_spp                    # (nt, 128)
    o_ref[...] += pooled.reshape(1, pooled.shape[0], 1, LANES)


def _head_kernel(feat_ref, w1_ref, w2_ref, w3_ref, b3_ref,
                 p1w_ref, p2w_ref, bp2_ref, z_ref, p_ref):
    """Projector fc (Lin+BN+ReLU x2, Lin+bias, BN affine=False) for student
    and teacher via block-diagonal weights, plus the student predictor.  One
    grid step per view -> per-view BN statistics (PyTorch training-mode
    semantics for the two separate encoder calls)."""

    def bn(x, relu):
        m = jnp.mean(x, axis=0, keepdims=True)
        v = jnp.mean(jnp.square(x - m), axis=0, keepdims=True)   # biased var
        y = (x - m) * lax.rsqrt(v + EPS)                         # EUP rsqrt
        return jnp.maximum(y, 0.0) if relu else y

    def lin(x, w_ref):
        return jnp.dot(x.astype(jnp.bfloat16), w_ref[...],
                       preferred_element_type=jnp.float32)

    x = feat_ref[0]                                  # [N, 128] student||teacher
    h = bn(lin(x, w1_ref), True)                     # block-diag fc1 + BN + ReLU
    h = bn(lin(h, w2_ref), True)                     # block-diag fc2 + BN + ReLU
    h = lin(h, w3_ref) + b3_ref[...]                 # block-diag fc3 + bias
    zcat = bn(h, False)                              # BatchNorm1d(dim, affine=False)
    p_ref[0] = zcat                                  # lanes [0,dim)=student z,
                                                     # [dim,2dim)=teacher p
    # student predictor (teacher lanes hit zero weight rows -> no leakage)
    q = bn(lin(zcat, p1w_ref), True)
    z_ref[0] = lin(q, p2w_ref) + bp2_ref[...]


# ----------------------------- kernel wrappers -----------------------------

def _choose_tiles(n_img, spp, row_cap=ROW_CAP):
    """Pick (images, spatial rows) per stem block with <= row_cap rows.

    The spatial chunk must divide spp and be a multiple of 8 (or be spp
    itself, which is always a legal full-dim block)."""
    if spp <= row_cap:
        nt = min(max(1, row_cap // spp), n_img)
        while n_img % nt:
            nt -= 1
        return nt, spp
    ts = spp
    for d in range(row_cap - row_cap % 8, 7, -8):
        if spp % d == 0:
            ts = d
            break
    # TODO(synk): if spp has no multiple-of-8 divisor <= row_cap we fall back
    # to a full-spp block, which may exceed VMEM for exotic spatial sizes.
    return 1, ts


def stem_stats(y, nt, ts):
    """Grid (views, image-tiles, spatial-tiles); image/spatial axes are
    reductions into a resident per-view [2,128] accumulator."""
    nv, n_img, spp, _ = y.shape
    return pl.pallas_call(
        _stem_stats_kernel,
        out_shape=jax.ShapeDtypeStruct((nv, 2, LANES), jnp.float32),
        grid_spec=pltpu.PrefetchScalarGridSpec(
            num_scalar_prefetch=0,
            grid=(nv, n_img // nt, spp // ts),
            in_specs=[pl.BlockSpec((1, nt, ts, LANES),
                                   lambda v, i, s: (v, i, s, 0))],
            out_specs=pl.BlockSpec((1, 2, LANES), lambda v, i, s: (v, 0, 0)),
        ),
        compiler_params=pltpu.CompilerParams(
            dimension_semantics=("parallel", "arbitrary", "arbitrary"),
            vmem_limit_bytes=VMEM_LIMIT,
        ),
    )(y)


def stem_pool(y, mean, invstd, nt, ts):
    """Grid (views, image-tiles, spatial-tiles); spatial axis accumulates the
    GAP sum into a resident (1, nt, 1, 128) output block."""
    nv, n_img, spp, _ = y.shape
    return pl.pallas_call(
        functools.partial(_stem_pool_kernel, inv_spp=1.0 / float(spp)),
        out_shape=jax.ShapeDtypeStruct((nv, n_img, 1, LANES), jnp.float32),
        grid_spec=pltpu.PrefetchScalarGridSpec(
            num_scalar_prefetch=0,
            grid=(nv, n_img // nt, spp // ts),
            in_specs=[
                pl.BlockSpec((1, nt, ts, LANES), lambda v, i, s: (v, i, s, 0)),
                pl.BlockSpec((1, 1, LANES), lambda v, i, s: (v, 0, 0)),
                pl.BlockSpec((1, 1, LANES), lambda v, i, s: (v, 0, 0)),
            ],
            out_specs=pl.BlockSpec((1, nt, 1, LANES),
                                   lambda v, i, s: (v, i, 0, 0)),
        ),
        compiler_params=pltpu.CompilerParams(
            dimension_semantics=("parallel", "parallel", "arbitrary"),
            vmem_limit_bytes=VMEM_LIMIT,
        ),
    )(y, mean, invstd)


def head_apply(feat, hw):
    """Single launch, grid over the two views (parallel -> megacore)."""
    nv, n_img, _ = feat.shape
    dz = hw["p2w"].shape[1]
    d3 = hw["w3"].shape[1]

    def full(a):
        return pl.BlockSpec(a.shape, lambda v, _nd=a.ndim: (0,) * _nd)

    return pl.pallas_call(
        _head_kernel,
        out_shape=(jax.ShapeDtypeStruct((nv, n_img, dz), jnp.float32),
                   jax.ShapeDtypeStruct((nv, n_img, d3), jnp.float32)),
        grid_spec=pltpu.PrefetchScalarGridSpec(
            num_scalar_prefetch=0,
            grid=(nv,),
            in_specs=[
                pl.BlockSpec((1, n_img, LANES), lambda v: (v, 0, 0)),
                full(hw["w1"]), full(hw["w2"]), full(hw["w3"]), full(hw["b3"]),
                full(hw["p1w"]), full(hw["p2w"]), full(hw["bp2"]),
            ],
            out_specs=(
                pl.BlockSpec((1, n_img, dz), lambda v: (v, 0, 0)),
                pl.BlockSpec((1, n_img, d3), lambda v: (v, 0, 0)),
            ),
        ),
        compiler_params=pltpu.CompilerParams(
            dimension_semantics=("parallel",),
            vmem_limit_bytes=VMEM_LIMIT,
        ),
    )(feat, hw["w1"], hw["w2"], hw["w3"], hw["b3"],
      hw["p1w"], hw["p2w"], hw["bp2"])


# --------------------------------- glue -----------------------------------

def _block_diag(a, b):
    ra, ca = a.shape
    rb, cb = b.shape
    top = jnp.concatenate([a, jnp.zeros((ra, cb), a.dtype)], axis=1)
    bot = jnp.concatenate([jnp.zeros((rb, ca), b.dtype), b], axis=1)
    return jnp.concatenate([top, bot], axis=0)


def _pad2(a, rows, cols):
    return jnp.pad(a, ((0, rows - a.shape[0]), (0, cols - a.shape[1])))


def _build_head_weights(enc, tch, prd):
    dim = enc["fc3_w"].shape[1]
    pdim = prd["pred1_w"].shape[1]
    d3 = _round_up(2 * dim, LANES)       # projector output lane width
    dp = _round_up(pdim, LANES)          # predictor hidden lane width
    dz = _round_up(dim, LANES)           # predictor output lane width

    w1 = _block_diag(enc["fc1_w"], tch["fc1_w"]).astype(jnp.bfloat16)
    w2 = _block_diag(enc["fc2_w"], tch["fc2_w"]).astype(jnp.bfloat16)
    w3 = _pad2(_block_diag(enc["fc3_w"], tch["fc3_w"]), LANES, d3)
    w3 = w3.astype(jnp.bfloat16)
    b3 = jnp.pad(jnp.concatenate([enc["fc3_b"], tch["fc3_b"]]),
                 (0, d3 - 2 * dim)).reshape(1, d3)

    p1w = _pad2(prd["pred1_w"], d3, dp).astype(jnp.bfloat16)
    p2w = _pad2(prd["pred2_w"], dp, dz).astype(jnp.bfloat16)
    bp2 = jnp.pad(prd["pred2_b"], (0, dz - dim)).reshape(1, dz)
    return {"w1": w1, "w2": w2, "w3": w3, "b3": b3,
            "p1w": p1w, "p2w": p2w, "bp2": bp2}


def mec_forward(params, x1, x2):
    enc, tch, prd = params["encoder"], params["teacher"], params["predictor"]
    dim = enc["fc3_w"].shape[1]

    # Stack both views; the leading "view" grid axis keeps BN statistics per
    # view, matching the separate encoder(x1) / encoder(x2) calls.
    x = jnp.stack([x1, x2], axis=0)                       # [V, N, C, H, W]
    nv, n_img, c, h, w = x.shape
    x = jnp.transpose(x, (0, 1, 3, 4, 2)).reshape(nv * n_img, h, w, c)

    # conv1 (7x7 / stride 2 / pad 3, no bias) for student and teacher in one
    # 128-channel conv (weights concatenated along the output axis).
    w_cat = jnp.concatenate([enc["conv1_w"], tch["conv1_w"]], axis=-1)
    y = lax.conv_general_dilated(
        x.astype(jnp.bfloat16), w_cat.astype(jnp.bfloat16),
        window_strides=(2, 2), padding=((3, 3), (3, 3)),
        dimension_numbers=("NHWC", "HWIO", "NHWC"),
        preferred_element_type=jnp.float32)
    oh, ow = y.shape[1], y.shape[2]
    spp = oh * ow
    # bf16 in HBM: halves the traffic of the two Pallas epilogue passes.
    y = y.reshape(nv, n_img, spp, LANES).astype(jnp.bfloat16)

    nt, ts = _choose_tiles(n_img, spp)

    # pass 1: per-view channel sum / sumsq, accumulated in-kernel.
    stats = stem_stats(y, nt, ts)                         # [V, 2, 128]
    cnt = float(n_img * spp)
    mean = stats[:, 0] / cnt
    var = stats[:, 1] / cnt - jnp.square(mean)            # biased batch var
    invstd = lax.rsqrt(var + EPS)
    mean = mean.reshape(nv, 1, LANES)
    invstd = invstd.reshape(nv, 1, LANES)

    # pass 2: fused BN + ReLU + global average pool (spatial reduction axis).
    feat = stem_pool(y, mean, invstd, nt, ts)             # [V, N, 1, 128]
    feat = feat.reshape(nv, n_img, LANES)

    # fused projector + predictor + teacher head (one launch, view grid).
    hw = _build_head_weights(enc, tch, prd)
    z_full, p_full = head_apply(feat, hw)
    z1 = z_full[0, :, :dim]
    z2 = z_full[1, :, :dim]
    p1 = lax.stop_gradient(p_full[0, :, dim:2 * dim])
    p2 = lax.stop_gradient(p_full[1, :, dim:2 * dim])
    return z1, z2, p1, p2


# ------------------------------ param init --------------------------------

def init_params(key, num_channels, dim, pred_dim, prev_dim=64):
    ks = jax.random.split(key, 8)
    scale = 0.05

    def nrm(k, shape):
        return scale * jax.random.normal(k, shape, dtype=jnp.float32)

    encoder = {
        # conv1 weight stored HWIO [7,7,C,64] (transpose of PyTorch's OIHW)
        "conv1_w": nrm(ks[0], (7, 7, num_channels, 64)),
        "fc1_w": nrm(ks[1], (prev_dim, prev_dim)),
        "fc2_w": nrm(ks[2], (prev_dim, prev_dim)),
        "fc3_w": nrm(ks[3], (prev_dim, dim)),
        "fc3_b": jnp.zeros((dim,), jnp.float32),   # requires_grad=False in torch
    }
    predictor = {
        "pred1_w": nrm(ks[4], (dim, pred_dim)),
        "pred2_w": nrm(ks[5], (pred_dim, dim)),
        "pred2_b": jnp.zeros((dim,), jnp.float32),
    }
    teacher = jax.tree_util.tree_map(jnp.copy, encoder)    # frozen deepcopy
    return {"encoder": encoder, "predictor": predictor, "teacher": teacher}


# --------------------------------- main ------------------------------------

if __name__ == "__main__":
    num_channels, dim, pred_dim = 4, 32, 16
    key = jax.random.PRNGKey(0)
    k_params, k_x1, k_x2 = jax.random.split(key, 3)

    params = init_params(k_params, num_channels, dim, pred_dim)

    x1 = jax.random.normal(k_x1, (2, num_channels, 16, 16), dtype=jnp.float32)
    x2 = jax.random.normal(k_x2, (2, num_channels, 16, 16), dtype=jnp.float32)

    z1, z2, p1, p2 = jax.block_until_ready(jax.jit(mec_forward)(params, x1, x2))
    assert z1.shape == (2, dim) and z2.shape == (2, dim)
    assert p1.shape == (2, dim) and p2.shape == (2, dim)
    print("KERNEL_OK")
</pallas_src>

<mosaic_0001>
module attributes {stable_mosaic.version = 11 : i64} {
  func.func @_stem_stats_kernel(%arg0: i32, %arg1: i32, %arg2: i32, %arg3: memref<1x2x64x128xbf16, #tpu.memory_space<vmem>>, %arg4: memref<1x2x128xf32, #tpu.memory_space<vmem>>) attributes {dimension_semantics = [#tpu.dimension_semantics<parallel>, #tpu.dimension_semantics<arbitrary>, #tpu.dimension_semantics<arbitrary>], iteration_bounds = array<i64: 2, 1, 1>, scalar_prefetch = 0 : i64, scratch_operands = 0 : i64, tpu.core_type = #tpu.core_type<tc>, window_params = [{transform_indices = @transform_0, window_bounds = array<i64: 1, 2, 64, 128>}, {transform_indices = @transform_1, window_bounds = array<i64: 1, 2, 128>}]} {
    %c0_i32 = arith.constant 0 : i32
    %0 = arith.cmpi eq, %arg1, %c0_i32 : i32
    %c0_i32_0 = arith.constant 0 : i32
    %1 = arith.cmpi eq, %arg2, %c0_i32_0 : i32
    %2 = arith.andi %0, %1 : i1
    %3 = arith.extui %2 : i1 to i32
    %c0_i32_1 = arith.constant 0 : i32
    %4 = arith.cmpi ne, %3, %c0_i32_1 : i32
    scf.if %4 {
      %cst_12 = arith.constant 0.000000e+00 : f32
      %19 = vector.broadcast %cst_12 : f32 to vector<1x2x128xf32>
      %c0_13 = arith.constant 0 : index
      %c0_14 = arith.constant 0 : index
      %c0_15 = arith.constant 0 : index
      %20 = vector.load %arg4[%c0_13, %c0_14, %c0_15] : memref<1x2x128xf32, #tpu.memory_space<vmem>>, vector<1x2x128xf32>
      tpu.vector_store %arg4[%c0_13, %c0_14, %c0_15], %19 {strides = array<i32>} : memref<1x2x128xf32, #tpu.memory_space<vmem>>, vector<1x2x128xf32>,
    } else {
    }
    %c0 = arith.constant 0 : index
    %c0_2 = arith.constant 0 : index
    %c0_3 = arith.constant 0 : index
    %c0_4 = arith.constant 0 : index
    %5 = vector.load %arg3[%c0, %c0_2, %c0_3, %c0_4] : memref<1x2x64x128xbf16, #tpu.memory_space<vmem>>, vector<1x2x64x128xbf16>
    %6 = vector.shape_cast %5 : vector<1x2x64x128xbf16> to vector<2x64x128xbf16>
    %7 = arith.extf %6 : vector<2x64x128xbf16> to vector<2x64x128xf32>
    %8 = vector.shape_cast %7 : vector<2x64x128xf32> to vector<128x128xf32>
    %cst = arith.constant dense<0.000000e+00> : vector<128xf32>
    %9 = vector.multi_reduction <add>, %8, %cst [0] : vector<128x128xf32> to vector<128xf32>
    %10 = vector.shape_cast %9 : vector<128xf32> to vector<1x128xf32>
    %11 = arith.mulf %8, %8 : vector<128x128xf32>
    %cst_5 = arith.constant dense<0.000000e+00> : vector<128xf32>
    %12 = vector.multi_reduction <add>, %11, %cst_5 [0] : vector<128x128xf32> to vector<128xf32>
    %13 = vector.shape_cast %12 : vector<128xf32> to vector<1x128xf32>
    %c0_6 = arith.constant 0 : index
    %c0_7 = arith.constant 0 : index
    %c0_8 = arith.constant 0 : index
    %14 = vector.load %arg4[%c0_6, %c0_7, %c0_8] : memref<1x2x128xf32, #tpu.memory_space<vmem>>, vector<1x2x128xf32>
    %15 = tpu.concatenate %10, %13 in 0 : vector<1x128xf32>, vector<1x128xf32> -> vector<2x128xf32>
    %16 = vector.shape_cast %15 : vector<2x128xf32> to vector<1x2x128xf32>
    %17 = arith.addf %14, %16 : vector<1x2x128xf32>
    %c0_9 = arith.constant 0 : index
    %c0_10 = arith.constant 0 : index
    %c0_11 = arith.constant 0 : index
    %18 = vector.load %arg4[%c0_9, %c0_10, %c0_11] : memref<1x2x128xf32, #tpu.memory_space<vmem>>, vector<1x2x128xf32>
    tpu.vector_store %arg4[%c0_9, %c0_10, %c0_11], %17 {strides = array<i32>} : memref<1x2x128xf32, #tpu.memory_space<vmem>>, vector<1x2x128xf32>,
    return
  }
  func.func @transform_0(%arg0: i32, %arg1: i32, %arg2: i32) -> (i32, i32, i32, i32) {
    %c0_i32 = arith.constant 0 : i32
    %c0_i32_0 = arith.constant 0 : i32
    return %arg0, %arg1, %arg2, %c0_i32 : i32, i32, i32, i32
  }
  func.func @transform_1(%arg0: i32, %arg1: i32, %arg2: i32) -> (i32, i32, i32) {
    %c0_i32 = arith.constant 0 : i32
    %c0_i32_0 = arith.constant 0 : i32
    %c0_i32_1 = arith.constant 0 : i32
    return %arg0, %c0_i32, %c0_i32_0 : i32, i32, i32
  }
}

module attributes {stable_mosaic.version = 11 : i64} {
  func.func @_stem_pool_kernel(%arg0: i32, %arg1: i32, %arg2: i32, %arg3: memref<1x2x64x128xbf16, #tpu.memory_space<vmem>>, %arg4: memref<1x1x128xf32, #tpu.memory_space<vmem>>, %arg5: memref<1x1x128xf32, #tpu.memory_space<vmem>>, %arg6: memref<1x2x1x128xf32, #tpu.memory_space<vmem>>) attributes {dimension_semantics = [#tpu.dimension_semantics<parallel>, #tpu.dimension_semantics<parallel>, #tpu.dimension_semantics<arbitrary>], iteration_bounds = array<i64: 2, 1, 1>, scalar_prefetch = 0 : i64, scratch_operands = 0 : i64, tpu.core_type = #tpu.core_type<tc>, window_params = [{transform_indices = @transform_0, window_bounds = array<i64: 1, 2, 64, 128>}, {transform_indices = @transform_1, window_bounds = array<i64: 1, 1, 128>}, {transform_indices = @transform_2, window_bounds = array<i64: 1, 1, 128>}, {transform_indices = @transform_3, window_bounds = array<i64: 1, 2, 1, 128>}]} {
    %c0_i32 = arith.constant 0 : i32
    %0 = arith.cmpi eq, %arg2, %c0_i32 : i32
    %1 = arith.extui %0 : i1 to i32
    %c0_i32_0 = arith.constant 0 : i32
    %2 = arith.cmpi ne, %1, %c0_i32_0 : i32
    scf.if %2 {
      %cst_20 = arith.constant 0.000000e+00 : f32
      %25 = vector.broadcast %cst_20 : f32 to vector<1x2x1x128xf32>
      %c0_21 = arith.constant 0 : index
      %c0_22 = arith.constant 0 : index
      %c0_23 = arith.constant 0 : index
      %c0_24 = arith.constant 0 : index
      %26 = vector.load %arg6[%c0_21, %c0_22, %c0_23, %c0_24] : memref<1x2x1x128xf32, #tpu.memory_space<vmem>>, vector<1x2x1x128xf32>
      tpu.vector_store %arg6[%c0_21, %c0_22, %c0_23, %c0_24], %25 {strides = array<i32>} : memref<1x2x1x128xf32, #tpu.memory_space<vmem>>, vector<1x2x1x128xf32>,
    } else {
    }
    %c0 = arith.constant 0 : index
    %c0_1 = arith.constant 0 : index
    %c0_2 = arith.constant 0 : index
    %c0_3 = arith.constant 0 : index
    %3 = vector.load %arg3[%c0, %c0_1, %c0_2, %c0_3] : memref<1x2x64x128xbf16, #tpu.memory_space<vmem>>, vector<1x2x64x128xbf16>
    %4 = vector.shape_cast %3 : vector<1x2x64x128xbf16> to vector<2x64x128xbf16>
    %5 = arith.extf %4 : vector<2x64x128xbf16> to vector<2x64x128xf32>
    %c0_4 = arith.constant 0 : index
    %c0_5 = arith.constant 0 : index
    %c0_6 = arith.constant 0 : index
    %6 = vector.load %arg4[%c0_4, %c0_5, %c0_6] : memref<1x1x128xf32, #tpu.memory_space<vmem>>, vector<1x1x128xf32>
    %7 = vector.shape_cast %6 : vector<1x1x128xf32> to vector<1x128xf32>
    %8 = vector.shape_cast %7 : vector<1x128xf32> to vector<1x1x128xf32>
    %9 = vector.broadcast %8 : vector<1x1x128xf32> to vector<2x64x128xf32>
    %10 = arith.subf %5, %9 : vector<2x64x128xf32>
    %c0_7 = arith.constant 0 : index
    %c0_8 = arith.constant 0 : index
    %c0_9 = arith.constant 0 : index
    %11 = vector.load %arg5[%c0_7, %c0_8, %c0_9] : memref<1x1x128xf32, #tpu.memory_space<vmem>>, vector<1x1x128xf32>
    %12 = vector.shape_cast %11 : vector<1x1x128xf32> to vector<1x128xf32>
    %13 = vector.shape_cast %12 : vector<1x128xf32> to vector<1x1x128xf32>
    %14 = vector.broadcast %13 : vector<1x1x128xf32> to vector<2x64x128xf32>
    %15 = arith.mulf %10, %14 : vector<2x64x128xf32>
    %cst = arith.constant 0.000000e+00 : f32
    %16 = vector.broadcast %cst : f32 to vector<2x64x128xf32>
    %17 = arith.maximumf %15, %16 : vector<2x64x128xf32>
    %cst_10 = arith.constant dense<0.000000e+00> : vector<2x128xf32>
    %18 = vector.multi_reduction <add>, %17, %cst_10 [1] : vector<2x64x128xf32> to vector<2x128xf32>
    %cst_11 = arith.constant 1.562500e-02 : f32
    %19 = vector.broadcast %cst_11 : f32 to vector<2x128xf32>
    %20 = arith.mulf %18, %19 : vector<2x128xf32>
    %c0_12 = arith.constant 0 : index
    %c0_13 = arith.constant 0 : index
    %c0_14 = arith.constant 0 : index
    %c0_15 = arith.constant 0 : index
    %21 = vector.load %arg6[%c0_12, %c0_13, %c0_14, %c0_15] : memref<1x2x1x128xf32, #tpu.memory_space<vmem>>, vector<1x2x1x128xf32>
    %22 = vector.shape_cast %20 : vector<2x128xf32> to vector<1x2x1x128xf32>
    %23 = arith.addf %21, %22 : vector<1x2x1x128xf32>
    %c0_16 = arith.constant 0 : index
    %c0_17 = arith.constant 0 : index
    %c0_18 = arith.constant 0 : index
    %c0_19 = arith.constant 0 : index
    %24 = vector.load %arg6[%c0_16, %c0_17, %c0_18, %c0_19] : memref<1x2x1x128xf32, #tpu.memory_space<vmem>>, vector<1x2x1x128xf32>
    tpu.vector_store %arg6[%c0_16, %c0_17, %c0_18, %c0_19], %23 {strides = array<i32>} : memref<1x2x1x128xf32, #tpu.memory_space<vmem>>, vector<1x2x1x128xf32>,
    return
  }
  func.func @transform_0(%arg0: i32, %arg1: i32, %arg2: i32) -> (i32, i32, i32, i32) {
    %c0_i32 = arith.constant 0 : i32
    %c0_i32_0 = arith.constant 0 : i32
    return %arg0, %arg1, %arg2, %c0_i32 : i32, i32, i32, i32
  }
  func.func @transform_1(%arg0: i32, %arg1: i32, %arg2: i32) -> (i32, i32, i32) {
    %c0_i32 = arith.constant 0 : i32
    %c0_i32_0 = arith.constant 0 : i32
    %c0_i32_1 = arith.constant 0 : i32
    return %arg0, %c0_i32, %c0_i32_0 : i32, i32, i32
  }
  func.func @transform_2(%arg0: i32, %arg1: i32, %arg2: i32) -> (i32, i32, i32) {
    %c0_i32 = arith.constant 0 : i32
    %c0_i32_0 = arith.constant 0 : i32
    %c0_i32_1 = arith.constant 0 : i32
    return %arg0, %c0_i32, %c0_i32_0 : i32, i32, i32
  }
  func.func @transform_3(%arg0: i32, %arg1: i32, %arg2: i32) -> (i32, i32, i32, i32) {
    %c0_i32 = arith.constant 0 : i32
    %c0_i32_0 = arith.constant 0 : i32
    %c0_i32_1 = arith.constant 0 : i32
    return %arg0, %arg1, %c0_i32, %c0_i32_0 : i32, i32, i32, i32
  }
}

module attributes {stable_mosaic.version = 11 : i64} {
  func.func @_head_kernel(%arg0: i32, %arg1: memref<1x2x128xf32, #tpu.memory_space<vmem>>, %arg2: memref<128x128xbf16, #tpu.memory_space<vmem>>, %arg3: memref<128x128xbf16, #tpu.memory_space<vmem>>, %arg4: memref<128x128xbf16, #tpu.memory_space<vmem>>, %arg5: memref<1x128xf32, #tpu.memory_space<vmem>>, %arg6: memref<128x128xbf16, #tpu.memory_space<vmem>>, %arg7: memref<128x128xbf16, #tpu.memory_space<vmem>>, %arg8: memref<1x128xf32, #tpu.memory_space<vmem>>, %arg9: memref<1x2x128xf32, #tpu.memory_space<vmem>>, %arg10: memref<1x2x128xf32, #tpu.memory_space<vmem>>) attributes {dimension_semantics = [#tpu.dimension_semantics<parallel>], iteration_bounds = array<i64: 2>, scalar_prefetch = 0 : i64, scratch_operands = 0 : i64, tpu.core_type = #tpu.core_type<tc>, window_params = [{transform_indices = @transform_0, window_bounds = array<i64: 1, 2, 128>}, {pipeline_mode = #tpu.pipeline_mode<synchronous>, transform_indices = @transform_1, window_bounds = array<i64: 128, 128>}, {pipeline_mode = #tpu.pipeline_mode<synchronous>, transform_indices = @transform_2, window_bounds = array<i64: 128, 128>}, {pipeline_mode = #tpu.pipeline_mode<synchronous>, transform_indices = @transform_3, window_bounds = array<i64: 128, 128>}, {pipeline_mode = #tpu.pipeline_mode<synchronous>, transform_indices = @transform_4, window_bounds = array<i64: 1, 128>}, {pipeline_mode = #tpu.pipeline_mode<synchronous>, transform_indices = @transform_5, window_bounds = array<i64: 128, 128>}, {pipeline_mode = #tpu.pipeline_mode<synchronous>, transform_indices = @transform_6, window_bounds = array<i64: 128, 128>}, {pipeline_mode = #tpu.pipeline_mode<synchronous>, transform_indices = @transform_7, window_bounds = array<i64: 1, 128>}, {transform_indices = @transform_8, window_bounds = array<i64: 1, 2, 128>}, {transform_indices = @transform_9, window_bounds = array<i64: 1, 2, 128>}]} {
    %c0 = arith.constant 0 : index
    %c0_0 = arith.constant 0 : index
    %c0_1 = arith.constant 0 : index
    %0 = vector.load %arg1[%c0, %c0_0, %c0_1] : memref<1x2x128xf32, #tpu.memory_space<vmem>>, vector<1x2x128xf32>
    %1 = vector.shape_cast %0 : vector<1x2x128xf32> to vector<2x128xf32>
    %2 = arith.truncf %1 : vector<2x128xf32> to vector<2x128xbf16>
    %c0_2 = arith.constant 0 : index
    %c0_3 = arith.constant 0 : index
    %3 = vector.load %arg2[%c0_2, %c0_3] : memref<128x128xbf16, #tpu.memory_space<vmem>>, vector<128x128xbf16>
    %cst = arith.constant dense<0.000000e+00> : vector<2x128xf32>
    %4 = tpu.matmul %2, %3, %cst {dimension_numbers = #tpu.dot_dimension_numbers<[1], [0], [0], [1], [0, 0, 1, 1], [], []>} : vector<2x128xbf16>, vector<128x128xbf16>, vector<2x128xf32> -> vector<2x128xf32>
    %cst_4 = arith.constant dense<0.000000e+00> : vector<128xf32>
    %5 = vector.multi_reduction <add>, %4, %cst_4 [0] : vector<2x128xf32> to vector<128xf32>
    %6 = vector.shape_cast %5 : vector<128xf32> to vector<1x128xf32>
    %cst_5 = arith.constant 2.000000e+00 : f32
    %7 = vector.broadcast %cst_5 : f32 to vector<1x128xf32>
    %8 = arith.divf %6, %7 : vector<1x128xf32>
    %9 = vector.broadcast %8 : vector<1x128xf32> to vector<2x128xf32>
    %10 = arith.subf %4, %9 : vector<2x128xf32>
    %11 = arith.mulf %10, %10 : vector<2x128xf32>
    %cst_6 = arith.constant dense<0.000000e+00> : vector<128xf32>
    %12 = vector.multi_reduction <add>, %11, %cst_6 [0] : vector<2x128xf32> to vector<128xf32>
    %13 = vector.shape_cast %12 : vector<128xf32> to vector<1x128xf32>
    %cst_7 = arith.constant 2.000000e+00 : f32
    %14 = vector.broadcast %cst_7 : f32 to vector<1x128xf32>
    %15 = arith.divf %13, %14 : vector<1x128xf32>
    %16 = vector.broadcast %8 : vector<1x128xf32> to vector<2x128xf32>
    %17 = arith.subf %4, %16 : vector<2x128xf32>
    %cst_8 = arith.constant 9.99999974E-6 : f32
    %18 = vector.broadcast %cst_8 : f32 to vector<1x128xf32>
    %19 = arith.addf %15, %18 : vector<1x128xf32>
    %20 = math.rsqrt %19 : vector<1x128xf32>
    %21 = vector.broadcast %20 : vector<1x128xf32> to vector<2x128xf32>
    %22 = arith.mulf %17, %21 : vector<2x128xf32>
    %cst_9 = arith.constant 0.000000e+00 : f32
    %23 = vector.broadcast %cst_9 : f32 to vector<2x128xf32>
    %24 = arith.maximumf %22, %23 : vector<2x128xf32>
    %25 = arith.truncf %24 : vector<2x128xf32> to vector<2x128xbf16>
    %c0_10 = arith.constant 0 : index
    %c0_11 = arith.constant 0 : index
    %26 = vector.load %arg3[%c0_10, %c0_11] : memref<128x128xbf16, #tpu.memory_space<vmem>>, vector<128x128xbf16>
    %cst_12 = arith.constant dense<0.000000e+00> : vector<2x128xf32>
    %27 = tpu.matmul %25, %26, %cst_12 {dimension_numbers = #tpu.dot_dimension_numbers<[1], [0], [0], [1], [0, 0, 1, 1], [], []>} : vector<2x128xbf16>, vector<128x128xbf16>, vector<2x128xf32> -> vector<2x128xf32>
    %cst_13 = arith.constant dense<0.000000e+00> : vector<128xf32>
    %28 = vector.multi_reduction <add>, %27, %cst_13 [0] : vector<2x128xf32> to vector<128xf32>
    %29 = vector.shape_cast %28 : vector<128xf32> to vector<1x128xf32>
    %cst_14 = arith.constant 2.000000e+00 : f32
    %30 = vector.broadcast %cst_14 : f32 to vector<1x128xf32>
    %31 = arith.divf %29, %30 : vector<1x128xf32>
    %32 = vector.broadcast %31 : vector<1x128xf32> to vector<2x128xf32>
    %33 = arith.subf %27, %32 : vector<2x128xf32>
    %34 = arith.mulf %33, %33 : vector<2x128xf32>
    %cst_15 = arith.constant dense<0.000000e+00> : vector<128xf32>
    %35 = vector.multi_reduction <add>, %34, %cst_15 [0] : vector<2x128xf32> to vector<128xf32>
    %36 = vector.shape_cast %35 : vector<128xf32> to vector<1x128xf32>
    %cst_16 = arith.constant 2.000000e+00 : f32
    %37 = vector.broadcast %cst_16 : f32 to vector<1x128xf32>
    %38 = arith.divf %36, %37 : vector<1x128xf32>
    %39 = vector.broadcast %31 : vector<1x128xf32> to vector<2x128xf32>
    %40 = arith.subf %27, %39 : vector<2x128xf32>
    %cst_17 = arith.constant 9.99999974E-6 : f32
    %41 = vector.broadcast %cst_17 : f32 to vector<1x128xf32>
    %42 = arith.addf %38, %41 : vector<1x128xf32>
    %43 = math.rsqrt %42 : vector<1x128xf32>
    %44 = vector.broadcast %43 : vector<1x128xf32> to vector<2x128xf32>
    %45 = arith.mulf %40, %44 : vector<2x128xf32>
    %cst_18 = arith.constant 0.000000e+00 : f32
    %46 = vector.broadcast %cst_18 : f32 to vector<2x128xf32>
    %47 = arith.maximumf %45, %46 : vector<2x128xf32>
    %48 = arith.truncf %47 : vector<2x128xf32> to vector<2x128xbf16>
    %c0_19 = arith.constant 0 : index
    %c0_20 = arith.constant 0 : index
    %49 = vector.load %arg4[%c0_19, %c0_20] : memref<128x128xbf16, #tpu.memory_space<vmem>>, vector<128x128xbf16>
    %cst_21 = arith.constant dense<0.000000e+00> : vector<2x128xf32>
    %50 = tpu.matmul %48, %49, %cst_21 {dimension_numbers = #tpu.dot_dimension_numbers<[1], [0], [0], [1], [0, 0, 1, 1], [], []>} : vector<2x128xbf16>, vector<128x128xbf16>, vector<2x128xf32> -> vector<2x128xf32>
    %c0_22 = arith.constant 0 : index
    %c0_23 = arith.constant 0 : index
    %51 = vector.load %arg5[%c0_22, %c0_23] : memref<1x128xf32, #tpu.memory_space<vmem>>, vector<1x128xf32>
    %52 = vector.broadcast %51 : vector<1x128xf32> to vector<2x128xf32>
    %53 = arith.addf %50, %52 : vector<2x128xf32>
    %cst_24 = arith.constant dense<0.000000e+00> : vector<128xf32>
    %54 = vector.multi_reduction <add>, %53, %cst_24 [0] : vector<2x128xf32> to vector<128xf32>
    %55 = vector.shape_cast %54 : vector<128xf32> to vector<1x128xf32>
    %cst_25 = arith.constant 2.000000e+00 : f32
    %56 = vector.broadcast %cst_25 : f32 to vector<1x128xf32>
    %57 = arith.divf %55, %56 : vector<1x128xf32>
    %58 = vector.broadcast %57 : vector<1x128xf32> to vector<2x128xf32>
    %59 = arith.subf %53, %58 : vector<2x128xf32>
    %60 = arith.mulf %59, %59 : vector<2x128xf32>
    %cst_26 = arith.constant dense<0.000000e+00> : vector<128xf32>
    %61 = vector.multi_reduction <add>, %60, %cst_26 [0] : vector<2x128xf32> to vector<128xf32>
    %62 = vector.shape_cast %61 : vector<128xf32> to vector<1x128xf32>
    %cst_27 = arith.constant 2.000000e+00 : f32
    %63 = vector.broadcast %cst_27 : f32 to vector<1x128xf32>
    %64 = arith.divf %62, %63 : vector<1x128xf32>
    %65 = vector.broadcast %57 : vector<1x128xf32> to vector<2x128xf32>
    %66 = arith.subf %53, %65 : vector<2x128xf32>
    %cst_28 = arith.constant 9.99999974E-6 : f32
    %67 = vector.broadcast %cst_28 : f32 to vector<1x128xf32>
    %68 = arith.addf %64, %67 : vector<1x128xf32>
    %69 = math.rsqrt %68 : vector<1x128xf32>
    %70 = vector.broadcast %69 : vector<1x128xf32> to vector<2x128xf32>
    %71 = arith.mulf %66, %70 : vector<2x128xf32>
    %c0_29 = arith.constant 0 : index
    %c0_30 = arith.constant 0 : index
    %c0_31 = arith.constant 0 : index
    %72 = vector.load %arg10[%c0_29, %c0_30, %c0_31] : memref<1x2x128xf32, #tpu.memory_space<vmem>>, vector<1x2x128xf32>
    %73 = vector.shape_cast %72 : vector<1x2x128xf32> to vector<2x128xf32>
    %74 = vector.shape_cast %71 : vector<2x128xf32> to vector<1x2x128xf32>
    tpu.vector_store %arg10[%c0_29, %c0_30, %c0_31], %74 {strides = array<i32>} : memref<1x2x128xf32, #tpu.memory_space<vmem>>, vector<1x2x128xf32>,
    %75 = arith.truncf %71 : vector<2x128xf32> to vector<2x128xbf16>
    %c0_32 = arith.constant 0 : index
    %c0_33 = arith.constant 0 : index
    %76 = vector.load %arg6[%c0_32, %c0_33] : memref<128x128xbf16, #tpu.memory_space<vmem>>, vector<128x128xbf16>
    %cst_34 = arith.constant dense<0.000000e+00> : vector<2x128xf32>
    %77 = tpu.matmul %75, %76, %cst_34 {dimension_numbers = #tpu.dot_dimension_numbers<[1], [0], [0], [1], [0, 0, 1, 1], [], []>} : vector<2x128xbf16>, vector<128x128xbf16>, vector<2x128xf32> -> vector<2x128xf32>
    %cst_35 = arith.constant dense<0.000000e+00> : vector<128xf32>
    %78 = vector.multi_reduction <add>, %77, %cst_35 [0] : vector<2x128xf32> to vector<128xf32>
    %79 = vector.shape_cast %78 : vector<128xf32> to vector<1x128xf32>
    %cst_36 = arith.constant 2.000000e+00 : f32
    %80 = vector.broadcast %cst_36 : f32 to vector<1x128xf32>
    %81 = arith.divf %79, %80 : vector<1x128xf32>
    %82 = vector.broadcast %81 : vector<1x128xf32> to vector<2x128xf32>
    %83 = arith.subf %77, %82 : vector<2x128xf32>
    %84 = arith.mulf %83, %83 : vector<2x128xf32>
    %cst_37 = arith.constant dense<0.000000e+00> : vector<128xf32>
    %85 = vector.multi_reduction <add>, %84, %cst_37 [0] : vector<2x128xf32> to vector<128xf32>
    %86 = vector.shape_cast %85 : vector<128xf32> to vector<1x128xf32>
    %cst_38 = arith.constant 2.000000e+00 : f32
    %87 = vector.broadcast %cst_38 : f32 to vector<1x128xf32>
    %88 = arith.divf %86, %87 : vector<1x128xf32>
    %89 = vector.broadcast %81 : vector<1x128xf32> to vector<2x128xf32>
    %90 = arith.subf %77, %89 : vector<2x128xf32>
    %cst_39 = arith.constant 9.99999974E-6 : f32
    %91 = vector.broadcast %cst_39 : f32 to vector<1x128xf32>
    %92 = arith.addf %88, %91 : vector<1x128xf32>
    %93 = math.rsqrt %92 : vector<1x128xf32>
    %94 = vector.broadcast %93 : vector<1x128xf32> to vector<2x128xf32>
    %95 = arith.mulf %90, %94 : vector<2x128xf32>
    %cst_40 = arith.constant 0.000000e+00 : f32
    %96 = vector.broadcast %cst_40 : f32 to vector<2x128xf32>
    %97 = arith.maximumf %95, %96 : vector<2x128xf32>
    %98 = arith.truncf %97 : vector<2x128xf32> to vector<2x128xbf16>
    %c0_41 = arith.constant 0 : index
    %c0_42 = arith.constant 0 : index
    %99 = vector.load %arg7[%c0_41, %c0_42] : memref<128x128xbf16, #tpu.memory_space<vmem>>, vector<128x128xbf16>
    %cst_43 = arith.constant dense<0.000000e+00> : vector<2x128xf32>
    %100 = tpu.matmul %98, %99, %cst_43 {dimension_numbers = #tpu.dot_dimension_numbers<[1], [0], [0], [1], [0, 0, 1, 1], [], []>} : vector<2x128xbf16>, vector<128x128xbf16>, vector<2x128xf32> -> vector<2x128xf32>
    %c0_44 = arith.constant 0 : index
    %c0_45 = arith.constant 0 : index
    %101 = vector.load %arg8[%c0_44, %c0_45] : memref<1x128xf32, #tpu.memory_space<vmem>>, vector<1x128xf32>
    %102 = vector.broadcast %101 : vector<1x128xf32> to vector<2x128xf32>
    %103 = arith.addf %100, %102 : vector<2x128xf32>
    %c0_46 = arith.constant 0 : index
    %c0_47 = arith.constant 0 : index
    %c0_48 = arith.constant 0 : index
    %104 = vector.load %arg9[%c0_46, %c0_47, %c0_48] : memref<1x2x128xf32, #tpu.memory_space<vmem>>, vector<1x2x128xf32>
    %105 = vector.shape_cast %104 : vector<1x2x128xf32> to vector<2x128xf32>
    %106 = vector.shape_cast %103 : vector<2x128xf32> to vector<1x2x128xf32>
    tpu.vector_store %arg9[%c0_46, %c0_47, %c0_48], %106 {strides = array<i32>} : memref<1x2x128xf32, #tpu.memory_space<vmem>>, vector<1x2x128xf32>,
    return
  }
  func.func @transform_0(%arg0: i32) -> (i32, i32, i32) {
    %c0_i32 = arith.constant 0 : i32
    %c0_i32_0 = arith.constant 0 : i32
    %c0_i32_1 = arith.constant 0 : i32
    return %arg0, %c0_i32, %c0_i32_0 : i32, i32, i32
  }
  func.func @transform_1(%arg0: i32) -> (i32, i32) {
    %c0_i32 = arith.constant 0 : i32
    %c0_i32_0 = arith.constant 0 : i32
    %c0_i32_1 = arith.constant 0 : i32
    return %c0_i32, %c0_i32_0 : i32, i32
  }
  func.func @transform_2(%arg0: i32) -> (i32, i32) {
    %c0_i32 = arith.constant 0 : i32
    %c0_i32_0 = arith.constant 0 : i32
    %c0_i32_1 = arith.constant 0 : i32
    return %c0_i32, %c0_i32_0 : i32, i32
  }
  func.func @transform_3(%arg0: i32) -> (i32, i32) {
    %c0_i32 = arith.constant 0 : i32
    %c0_i32_0 = arith.constant 0 : i32
    %c0_i32_1 = arith.constant 0 : i32
    return %c0_i32, %c0_i32_0 : i32, i32
  }
  func.func @transform_4(%arg0: i32) -> (i32, i32) {
    %c0_i32 = arith.constant 0 : i32
    %c0_i32_0 = arith.constant 0 : i32
    %c0_i32_1 = arith.constant 0 : i32
    return %c0_i32, %c0_i32_0 : i32, i32
  }
  func.func @transform_5(%arg0: i32) -> (i32, i32) {
    %c0_i32 = arith.constant 0 : i32
    %c0_i32_0 = arith.constant 0 : i32
    %c0_i32_1 = arith.constant 0 : i32
    return %c0_i32, %c0_i32_0 : i32, i32
  }
  func.func @transform_6(%arg0: i32) -> (i32, i32) {
    %c0_i32 = arith.constant 0 : i32
    %c0_i32_0 = arith.constant 0 : i32
    %c0_i32_1 = arith.constant 0 : i32
    return %c0_i32, %c0_i32_0 : i32, i32
  }
  func.func @transform_7(%arg0: i32) -> (i32, i32) {
    %c0_i32 = arith.constant 0 : i32
    %c0_i32_0 = arith.constant 0 : i32
    %c0_i32_1 = arith.constant 0 : i32
    return %c0_i32, %c0_i32_0 : i32, i32
  }
  func.func @transform_8(%arg0: i32) -> (i32, i32, i32) {
    %c0_i32 = arith.constant 0 : i32
    %c0_i32_0 = arith.constant 0 : i32
    %c0_i32_1 = arith.constant 0 : i32
    return %arg0, %c0_i32, %c0_i32_0 : i32, i32, i32
  }
  func.func @transform_9(%arg0: i32) -> (i32, i32, i32) {
    %c0_i32 = arith.constant 0 : i32
    %c0_i32_0 = arith.constant 0 : i32
    %c0_i32_1 = arith.constant 0 : i32
    return %arg0, %c0_i32, %c0_i32_0 : i32, i32, i32
  }
}

</mosaic_0001>

<llo_original>
// kernel: mec_forward.4
$region0: #{mec_forward.4}
  #allocation0 [shape = 'u32[]', space=smem, size = 0x4, offset = 0x4, fixed_abs, tag = 'smem constant byte address 0x4 - core index']
  #allocation1 [shape = 'u32[144,128]{1,0:T(1,128)}', space=vmem, size = 0x12000, scoped, tag = 'internal scratch']
  %s0 = inlined_call_operand.vmem [shape: bf16[2,2,64,128], index: 0, kind: input, shape index: {}]
  %s1 = inlined_call_operand.vmem [shape: f32[2,1,128], index: 1, kind: input, shape index: {}]
  %s2 = inlined_call_operand.vmem [shape: f32[2,1,128], index: 2, kind: input, shape index: {}]
  %s3 = inlined_call_operand.vmem [shape: f32[2,2,1,128], index: 3, kind: output, shape index: {}]
  %s4 = sld [smem:[#allocation0]]
  $region49: #{mec_forward.4} parent=0
    _
  %s6 = ssub.s32 1, %s4
  %s7 = scalar_select 0, %s6, %s4
  loop: start=0, step=1, limit=4
  $region2: #{mec_forward.4} parent=0 // loop_pre_header
    _
  $region3: #{mec_forward.4} parent=0 // loop_header
    %s9 = sphi 0, %s13
    %p10 = scmp.ge.s32.totalorder %s9, 4
    %s16 = sphi 0, %s35
    %s17 = sphi 0, %s31
    %s18 = sphi 0, %s27
    %s19 = sphi 0, %s16
    %s20 = sphi 0, %s17
    %s21 = sphi 0, %s18
    %s22 = sphi 0, %s19
    %s23 = sphi 0, %s20
    %s24 = sphi 0, %s21
    %s42 = sphi 0, %s44
    %s45 = sphi 0, %s42
    %s46 = sphi 0, %s45
    %s62 = sphi 0, %s46
    %s68 = sphi 0, %s70
    %s71 = sphi 0, %s68
    %s72 = sphi 0, %s71
    %s88 = sphi 0, %s72
    %s94 = sphi 0, %s96
    %s97 = sphi 0, %s94
    %s98 = sphi 0, %s97
    %s114 = sphi 0, %s98
    %s122 = sphi 0, %s124
    %s125 = sphi 0, %s122
    %s126 = sphi 0, %s125
    %s142 = sphi 0, %s126
  $region4: #{mec_forward.4} parent=0 // loop_header_branch
    %12 = sbr.rel (%p10) target = $region8
  $region5: #{mec_forward.4} parent=0 // loop_body
    %s14 = ssub.s32 %s9, 1
    %s15 = ssub.s32 %s9, 2
    %s25 = sadd.s32 1, %s18
    %p26 = scmp.ge.s32.totalorder %s25, 1
    %s27 = scalar_select %p26, 0, %s25
    %s28 = sadd.s32 1, %s17
    %s29 = scalar_select %p26, %s28, %s17
    %p30 = scmp.ge.s32.totalorder %s29, 1
    %s31 = scalar_select %p30, 0, %s29
    %s32 = sadd.s32 1, %s16
    %s33 = scalar_select %p30, %s32, %s16
    %p34 = scmp.ge.s32.totalorder %s33, 2
    %s35 = scalar_select %p34, 0, %s33
    %s36 = ssub.s32 %s16, %s35
    %s37 = ssub.s32 %s17, %s31
    %s38 = sor.u32 %s36, %s37
    %s39 = ssub.s32 %s18, %s27
    %s40 = sor.u32 %s38, %s39
    %p41 = scmp.eq.s32.totalorder %s40, 0
    %s43 = sadd.s32 %s42, 1
    %s44 = scalar_select %p41, %s42, %s43
    %p47 = pneg %p41
    %p48 = scmp.eq.s32.totalorder %s9, 1
    %p49 = por %p47, %p48
    %p50 = scmp.ne.s32.totalorder %s42, %s45
    %p51 = scmp.eq.s32.totalorder %s9, 0
    %p52 = por %p50, %p51
    %p53 = scmp.ne.s32.totalorder %s42, %s45
    %p54 = scmp.eq.s32.totalorder %s14, 1
    %p55 = por %p53, %p54
    %p56 = scmp.ne.s32.totalorder %s45, %s46
    %p57 = scmp.eq.s32.totalorder %s14, 0
    %p58 = por %p56, %p57
    %p59 = scmp.ne.s32.totalorder %s45, %s46
    %p60 = scmp.eq.s32.totalorder %s15, 1
    %p61 = por %p59, %p60
    %p63 = scmp.ne.s32.totalorder %s46, %s62
    %p64 = scmp.eq.s32.totalorder %s15, 0
    %p65 = por %p63, %p64
    %s66 = ssub.s32 %s16, %s35
    %p67 = scmp.eq.s32.totalorder %s66, 0
    %s69 = sadd.s32 %s68, 1
    %s70 = scalar_select %p67, %s68, %s69
    %p73 = pneg %p67
    %p74 = scmp.eq.s32.totalorder %s9, 1
    %p75 = por %p73, %p74
    %p76 = scmp.ne.s32.totalorder %s68, %s71
    %p77 = scmp.eq.s32.totalorder %s9, 0
    %p78 = por %p76, %p77
    %p79 = scmp.ne.s32.totalorder %s68, %s71
    %p80 = scmp.eq.s32.totalorder %s14, 1
    %p81 = por %p79, %p80
    %p82 = scmp.ne.s32.totalorder %s71, %s72
    %p83 = scmp.eq.s32.totalorder %s14, 0
    %p84 = por %p82, %p83
    %p85 = scmp.ne.s32.totalorder %s71, %s72
    %p86 = scmp.eq.s32.totalorder %s15, 1
    %p87 = por %p85, %p86
    %p89 = scmp.ne.s32.totalorder %s72, %s88
    %p90 = scmp.eq.s32.totalorder %s15, 0
    %p91 = por %p89, %p90
    %s92 = ssub.s32 %s16, %s35
    %p93 = scmp.eq.s32.totalorder %s92, 0
    %s95 = sadd.s32 %s94, 1
    %s96 = scalar_select %p93, %s94, %s95
    %p99 = pneg %p93
    %p100 = scmp.eq.s32.totalorder %s9, 1
    %p101 = por %p99, %p100
    %p102 = scmp.ne.s32.totalorder %s94, %s97
    %p103 = scmp.eq.s32.totalorder %s9, 0
    %p104 = por %p102, %p103
    %p105 = scmp.ne.s32.totalorder %s94, %s97
    %p106 = scmp.eq.s32.totalorder %s14, 1
    %p107 = por %p105, %p106
    %p108 = scmp.ne.s32.totalorder %s97, %s98
    %p109 = scmp.eq.s32.totalorder %s14, 0
    %p110 = por %p108, %p109
    %p111 = scmp.ne.s32.totalorder %s97, %s98
    %p112 = scmp.eq.s32.totalorder %s15, 1
    %p113 = por %p111, %p112
    %p115 = scmp.ne.s32.totalorder %s98, %s114
    %p116 = scmp.eq.s32.totalorder %s15, 0
    %p117 = por %p115, %p116
    %s118 = ssub.s32 %s16, %s35
    %s119 = ssub.s32 %s17, %s31
    %s120 = sor.u32 %s118, %s119
    %p121 = scmp.eq.s32.totalorder %s120, 0
    %s123 = sadd.s32 %s122, 1
    %s124 = scalar_select %p121, %s122, %s123
    %p127 = pneg %p121
    %p128 = scmp.eq.s32.totalorder %s9, 1
    %p129 = por %p127, %p128
    %p130 = scmp.ne.s32.totalorder %s122, %s125
    %p131 = scmp.eq.s32.totalorder %s9, 0
    %p132 = por %p130, %p131
    %p133 = scmp.ne.s32.totalorder %s122, %s125
    %p134 = scmp.eq.s32.totalorder %s14, 1
    %p135 = por %p133, %p134
    %p136 = scmp.ne.s32.totalorder %s125, %s126
    %p137 = scmp.eq.s32.totalorder %s14, 0
    %p138 = por %p136, %p137
    %p139 = scmp.ne.s32.totalorder %s125, %s126
    %p140 = scmp.eq.s32.totalorder %s15, 1
    %p141 = por %p139, %p140
    %p143 = scmp.ne.s32.totalorder %s126, %s142
    %p144 = scmp.eq.s32.totalorder %s15, 0
    %p145 = por %p143, %p144
    %p146 = scmp.le.s32.totalorder 1, %s9
    %p147 = scmp.lt.s32.totalorder %s9, 3
    %p148 = pnand %p146, %p147
    %p149 = pneg %p148
    // Predicated region
    $region9: #{mec_forward.4} parent=5 // pred_check
      _
    $region10: #{mec_forward.4} parent=5 // pred_check_branch
      %151 = sbr.rel (%p148) target = $region12
    $region11: #{mec_forward.4} parent=5 // pred_region
      %s152 = ssub.s32 %s9, 1
    $region12: #{mec_forward.4} parent=5 // pred_fallthru
      _
    %p153 = scmp.lt.s32.totalorder %s9, 2
    // Predicated region
    $region13: #{mec_forward.4} parent=5 // pred_check
      %p154 = pneg %p153
    $region14: #{mec_forward.4} parent=5 // pred_check_branch
      %156 = sbr.rel (%p154) target = $region16
    $region15: #{mec_forward.4} parent=5 // pred_region
      // Predicated region
      $region17: #{mec_forward.4} parent=15 // pred_check
        %p157 = pneg %p52
      $region18: #{mec_forward.4} parent=15 // pred_check_branch
        %159 = sbr.rel (%p157) target = $region20
      $region19: #{mec_forward.4} parent=15 // pred_region
        %s160 = smul.u32 2, %s17
        %s161 = smul.u32 8, %s18
        %p162 = scmp.lt.s32.totalorder %s16, 1
        %s163 = scalar_select %p162, %s16, 1
        %p164 = scmp.lt.s32.totalorder %s160, 1
        %s165 = scalar_select %p164, %s160, 1
        %p166 = scmp.lt.s32.totalorder %s161, 7
        %s167 = scalar_select %p166, %s161, 7
        %s168 = smul.addr %s165, 8
        %s169 = sadd.s32 %s167, %s168
        %s170 = smul.addr %s163, 16
        %s171 = sadd.s32 %s169, %s170
        %s172 = smul.addr %s171, 4
        %s173 = scalar_lea.vmem %s0, %s172
        %s174 = smul.u32 2, %s17
        %s175 = smul.u32 8, %s18
      $region20: #{mec_forward.4} parent=15 // pred_fallthru
        _
      // Predicated region
      $region21: #{mec_forward.4} parent=15 // pred_check
        %p176 = pneg %p78
      $region22: #{mec_forward.4} parent=15 // pred_check_branch
        %178 = sbr.rel (%p176) target = $region24
      $region23: #{mec_forward.4} parent=15 // pred_region
        %p179 = scmp.lt.s32.totalorder %s16, 1
        %s180 = scalar_select %p179, %s16, 1
        %s181 = scalar_lea.vmem %s1, %s180
      $region24: #{mec_forward.4} parent=15 // pred_fallthru
        _
      // Predicated region
      $region25: #{mec_forward.4} parent=15 // pred_check
        %p182 = pneg %p104
      $region26: #{mec_forward.4} parent=15 // pred_check_branch
        %184 = sbr.rel (%p182) target = $region28
      $region27: #{mec_forward.4} parent=15 // pred_region
        %p185 = scmp.lt.s32.totalorder %s16, 1
        %s186 = scalar_select %p185, %s16, 1
        %s187 = scalar_lea.vmem %s2, %s186
      $region28: #{mec_forward.4} parent=15 // pred_fallthru
        _
    $region16: #{mec_forward.4} parent=5 // pred_fallthru
      _
    %p188 = scmp.le.s32.totalorder 1, %s9
    %p189 = scmp.lt.s32.totalorder %s9, 3
    %p190 = pnand %p188, %p189
    %p191 = pneg %p190
    // Predicated region
    $region29: #{mec_forward.4} parent=5 // pred_check
      _
    $region30: #{mec_forward.4} parent=5 // pred_check_branch
      %193 = sbr.rel (%p190) target = $region32
    $region31: #{mec_forward.4} parent=5 // pred_region
      %s194 = ssub.s32 %s9, 1
      %s195 = smul.u32 2, %s20
      %s196 = smul.u32 8, %s21
      %p197 = scmp.lt.s32.totalorder %s19, 1
      %s198 = scalar_select %p197, %s19, 1
      %p199 = scmp.lt.s32.totalorder %s195, 1
      %s200 = scalar_select %p199, %s195, 1
      %p201 = scmp.lt.s32.totalorder %s196, 7
      %s202 = scalar_select %p201, %s196, 7
      %s203 = smul.addr %s200, 8
      %s204 = sadd.s32 %s202, %s203
      %s205 = smul.addr %s198, 16
      %s206 = sadd.s32 %s204, %s205
      %s207 = smul.addr %s206, 4
      %s208 = scalar_lea.vmem %s0, %s207
      %p209 = pneg %p58
      %p210 = pneg %p55
      %p211 = scmp.lt.s32.totalorder %s19, 1
      %s212 = scalar_select %p211, %s19, 1
      %s213 = scalar_lea.vmem %s1, %s212
      %p214 = pneg %p84
      %p215 = pneg %p81
      %p216 = scmp.lt.s32.totalorder %s19, 1
      %s217 = scalar_select %p216, %s19, 1
      %s218 = scalar_lea.vmem %s2, %s217
      %p219 = pneg %p110
      %p220 = pneg %p107
      %p221 = pneg %p138
      %p222 = pneg %p135
      %s223 = smul.u32 2, %s20
      %p224 = scmp.lt.s32.totalorder %s19, 1
      %s225 = scalar_select %p224, %s19, 1
      %p226 = scmp.lt.s32.totalorder %s223, 1
      %s227 = scalar_select %p226, %s223, 1
      %s228 = smul.addr %s225, 2
      %s229 = sadd.s32 %s227, %s228
      %s230 = scalar_lea.vmem %s3, %s229
      %s231 = smul.u32 2, %s20
      %s232 = smul.u32 8, %s21
      %p233 = scmp.lt.s32.totalorder %s19, 1
      %s234 = scalar_select %p233, %s19, 1
      %p235 = scmp.lt.s32.totalorder %s231, 1
      %s236 = scalar_select %p235, %s231, 1
      %p237 = scmp.lt.s32.totalorder %s232, 7
      %s238 = scalar_select %p237, %s232, 7
      %s239 = smul.addr %s236, 8
      %s240 = sadd.s32 %s238, %s239
      %s241 = smul.addr %s234, 16
      %s242 = sadd.s32 %s240, %s241
      %s243 = smul.addr %s242, 4
      %s244 = scalar_lea.vmem %s0, %s243
      %s245 = smul.u32 2, %s20
      %s246 = smul.u32 8, %s21
      %p247 = scmp.lt.s32.totalorder %s19, 1
      %s248 = scalar_select %p247, %s19, 1
      %s249 = scalar_lea.vmem %s1, %s248
      %p250 = scmp.lt.s32.totalorder %s19, 1
      %s251 = scalar_select %p250, %s19, 1
      %s252 = scalar_lea.vmem %s2, %s251
      %s253 = smul.u32 2, %s20
      %p254 = scmp.lt.s32.totalorder %s19, 1
      %s255 = scalar_select %p254, %s19, 1
      %p256 = scmp.lt.s32.totalorder %s253, 1
      %s257 = scalar_select %p256, %s253, 1
      %s258 = smul.addr %s255, 2
      %s259 = sadd.s32 %s257, %s258
      %s260 = scalar_lea.vmem %s3, %s259
      %s261 = smul.u32 2, %s20
      %p262 = scmp.eq.s32.totalorder %s21, 0
      // Predicated region
      $region33: #{mec_forward.4} parent=31 // pred_check
        %p263 = pneg %p262
      $region34: #{mec_forward.4} parent=31 // pred_check_branch
        %265 = sbr.rel (%p263) target = $region36
      $region35: #{mec_forward.4} parent=31 // pred_region
        %266 = vst [vmem:[%s260] sm:$0x1] 0.0
        %267 = vst [vmem:[%s260 + $0x1] sm:$0x1] 0.0
      $region36: #{mec_forward.4} parent=31 // pred_fallthru
        _
      %v268 = vld [vmem:[%s244] sm:$0xf]
      %v269 = vld [vmem:[%s244 + $0x4] sm:$0xf]
      %v270 = vld [vmem:[%s244 + $0x8] sm:$0xf]
      %v271 = vld [vmem:[%s244 + $0xc] sm:$0xf]
      %v272 = vld [vmem:[%s244 + $0x10] sm:$0xf]
      %v273 = vld [vmem:[%s244 + $0x14] sm:$0xf]
      %v274 = vld [vmem:[%s244 + $0x18] sm:$0xf]
      %v275 = vld [vmem:[%s244 + $0x1c] sm:$0xf]
      %v276 = vld [vmem:[%s244 + $0x20] sm:$0xf]
      %v277 = vld [vmem:[%s244 + $0x24] sm:$0xf]
      %v278 = vld [vmem:[%s244 + $0x28] sm:$0xf]
      %v279 = vld [vmem:[%s244 + $0x2c] sm:$0xf]
      %v280 = vld [vmem:[%s244 + $0x30] sm:$0xf]
      %v281 = vld [vmem:[%s244 + $0x34] sm:$0xf]
      %v282 = vld [vmem:[%s244 + $0x38] sm:$0xf]
      %v283 = vld [vmem:[%s244 + $0x3c] sm:$0xf]
      %v284 = vunpack.c.l.bf16 %v268
      %v285 = vunpack.c.l.bf16 %v269
      %v286 = vunpack.c.l.bf16 %v270
      %v287 = vunpack.c.l.bf16 %v271
      %v288 = vunpack.c.l.bf16 %v272
      %v289 = vunpack.c.l.bf16 %v273
      %v290 = vunpack.c.l.bf16 %v274
      %v291 = vunpack.c.l.bf16 %v275
      %v292 = vunpack.c.l.bf16 %v276
      %v293 = vunpack.c.l.bf16 %v277
      %v294 = vunpack.c.l.bf16 %v278
      %v295 = vunpack.c.l.bf16 %v279
      %v296 = vunpack.c.l.bf16 %v280
      %v297 = vunpack.c.l.bf16 %v281
      %v298 = vunpack.c.l.bf16 %v282
      %v299 = vunpack.c.l.bf16 %v283
      %v300 = vld [vmem:[%s249] sm:$0x1]
      %v302 = vlaneseq
      %v303 = vshrl.u32 %v302, 7
      %v304 = vsub.s32 0, %v303
      %v305 = vrot.slane %v300, %v304
      %v307 = vsub.f32 %v284, %v305
      %v308 = vsub.f32 %v285, %v305
      %v309 = vsub.f32 %v286, %v305
      %v310 = vsub.f32 %v287, %v305
      %v311 = vsub.f32 %v288, %v305
      %v312 = vsub.f32 %v289, %v305
      %v313 = vsub.f32 %v290, %v305
      %v314 = vsub.f32 %v291, %v305
      %v315 = vsub.f32 %v292, %v305
      %v316 = vsub.f32 %v293, %v305
      %v317 = vsub.f32 %v294, %v305
      %v318 = vsub.f32 %v295, %v305
      %v319 = vsub.f32 %v296, %v305
      %v320 = vsub.f32 %v297, %v305
      %v321 = vsub.f32 %v298, %v305
      %v322 = vsub.f32 %v299, %v305
      %v323 = vld [vmem:[%s252] sm:$0x1]
      %v325 = vlaneseq
      %v326 = vshrl.u32 %v325, 7
      %v327 = vsub.s32 0, %v326
      %v328 = vrot.slane %v323, %v327
      %v330 = vmul.f32 %v307, %v328
      %v331 = vmul.f32 %v308, %v328
      %v332 = vmul.f32 %v309, %v328
      %v333 = vmul.f32 %v310, %v328
      %v334 = vmul.f32 %v311, %v328
      %v335 = vmul.f32 %v312, %v328
      %v336 = vmul.f32 %v313, %v328
      %v337 = vmul.f32 %v314, %v328
      %v338 = vmul.f32 %v315, %v328
      %v339 = vmul.f32 %v316, %v328
      %v340 = vmul.f32 %v317, %v328
      %v341 = vmul.f32 %v318, %v328
      %v342 = vmul.f32 %v319, %v328
      %v343 = vmul.f32 %v320, %v328
      %v344 = vmul.f32 %v321, %v328
      %v345 = vmul.f32 %v322, %v328
      %v346 = vmax.f32 %v330, 0.0
      %v347 = vmax.f32 %v331, 0.0
      %v348 = vmax.f32 %v332, 0.0
      %v349 = vmax.f32 %v333, 0.0
      %v350 = vmax.f32 %v334, 0.0
      %v351 = vmax.f32 %v335, 0.0
      %v352 = vmax.f32 %v336, 0.0
      %v353 = vmax.f32 %v337, 0.0
      %v354 = vmax.f32 %v338, 0.0
      %v355 = vmax.f32 %v339, 0.0
      %v356 = vmax.f32 %v340, 0.0
      %v357 = vmax.f32 %v341, 0.0
      %v358 = vmax.f32 %v342, 0.0
      %v359 = vmax.f32 %v343, 0.0
      %v360 = vmax.f32 %v344, 0.0
      %v361 = vmax.f32 %v345, 0.0
      %v362 = vadd.f32 %v346, %v347
      %v363 = vadd.f32 %v362, %v348
      %v364 = vadd.f32 %v363, %v349
      %v365 = vadd.f32 %v364, %v350
      %v366 = vadd.f32 %v365, %v351
      %v367 = vadd.f32 %v366, %v352
      %v368 = vadd.f32 %v367, %v353
      %v369 = vrot.slane %v368, 4
      %v370 = vadd.f32 %v368, %v369
      %v371 = vrot.slane %v370, 2
      %v372 = vadd.f32 %v370, %v371
      %v373 = vrot.slane %v372, 1
      %v374 = vadd.f32 %v372, %v373
      %v375 = vadd.f32 %v354, %v355
      %v376 = vadd.f32 %v375, %v356
      %v377 = vadd.f32 %v376, %v357
      %v378 = vadd.f32 %v377, %v358
      %v379 = vadd.f32 %v378, %v359
      %v380 = vadd.f32 %v379, %v360
      %v381 = vadd.f32 %v380, %v361
      %v382 = vrot.slane %v381, 4
      %v383 = vadd.f32 %v381, %v382
      %v384 = vrot.slane %v383, 2
      %v385 = vadd.f32 %v383, %v384
      %v386 = vrot.slane %v385, 1
      %v387 = vadd.f32 %v385, %v386
      %v388 = vmul.f32 %v374, 0.015625
      %v389 = vmul.f32 %v387, 0.015625
      %v390 = vld [vmem:[%s260] sm:$0x1]
      %v391 = vld [vmem:[%s260 + $0x1] sm:$0x1]
      %v392 = vadd.f32 %v390, %v388
      %v393 = vadd.f32 %v391, %v389
      %394 = vst [vmem:[%s260] sm:$0x1] %v392
      %395 = vst [vmem:[%s260 + $0x1] sm:$0x1] %v393
      %s396 = smul.u32 2, %s20
      %p397 = scmp.lt.s32.totalorder %s19, 1
      %s398 = scalar_select %p397, %s19, 1
      %p399 = scmp.lt.s32.totalorder %s396, 1
      %s400 = scalar_select %p399, %s396, 1
      %s401 = smul.addr %s398, 2
      %s402 = sadd.s32 %s400, %s401
      %s403 = scalar_lea.vmem %s3, %s402
      // Predicated region
      $region37: #{mec_forward.4} parent=31 // pred_check
        %p404 = pneg %p135
      $region38: #{mec_forward.4} parent=31 // pred_check_branch
        %406 = sbr.rel (%p404) target = $region40
      $region39: #{mec_forward.4} parent=31 // pred_region
        %s407 = smul.u32 2, %s20
      $region40: #{mec_forward.4} parent=31 // pred_fallthru
        _
    $region32: #{mec_forward.4} parent=5 // pred_fallthru
      _
    %p408 = scmp.le.s32.totalorder 2, %s9
    // Predicated region
    $region41: #{mec_forward.4} parent=5 // pred_check
      %p409 = pneg %p408
    $region42: #{mec_forward.4} parent=5 // pred_check_branch
      %411 = sbr.rel (%p409) target = $region44
    $region43: #{mec_forward.4} parent=5 // pred_region
      %s412 = ssub.s32 %s9, 2
      // Predicated region
      $region45: #{mec_forward.4} parent=43 // pred_check
        %p413 = pneg %p141
      $region46: #{mec_forward.4} parent=43 // pred_check_branch
        %415 = sbr.rel (%p413) target = $region48
      $region47: #{mec_forward.4} parent=43 // pred_region
        %s416 = smul.u32 2, %s23
        %p417 = scmp.lt.s32.totalorder %s22, 1
        %s418 = scalar_select %p417, %s22, 1
        %p419 = scmp.lt.s32.totalorder %s416, 1
        %s420 = scalar_select %p419, %s416, 1
        %s421 = smul.addr %s418, 2
        %s422 = sadd.s32 %s420, %s421
        %s423 = scalar_lea.vmem %s3, %s422
      $region48: #{mec_forward.4} parent=43 // pred_fallthru
        _
    $region44: #{mec_forward.4} parent=5 // pred_fallthru
      _
  $region6: #{mec_forward.4} parent=0 // loop_footer
    %s13 = sadd.s32 1, %s9
  $region7: #{mec_forward.4} parent=0 // loop_footer_branch
    %8 = sbr.rel target = $region3
  $region8: #{mec_forward.4} parent=0 // loop_exit
    _

// kernel: mec_forward.3
$region0: #{mec_forward.3}
  #allocation0 [shape = 'u32[]', space=smem, size = 0x4, offset = 0x4, fixed_abs, tag = 'smem constant byte address 0x4 - core index']
  #allocation1 [shape = 'u32[144,128]{1,0:T(1,128)}', space=vmem, size = 0x12000, scoped, tag = 'internal scratch']
  %s0 = inlined_call_operand.vmem [shape: bf16[2,2,64,128], index: 0, kind: input, shape index: {}]
  %s1 = inlined_call_operand.vmem [shape: f32[2,2,128], index: 1, kind: output, shape index: {}]
  %s2 = sld [smem:[#allocation0]]
  $region41: #{mec_forward.3} parent=0
    _
  %s4 = ssub.s32 1, %s2
  %s5 = scalar_select 0, %s4, %s2
  loop: start=0, step=1, limit=4
  $region2: #{mec_forward.3} parent=0 // loop_pre_header
    _
  $region3: #{mec_forward.3} parent=0 // loop_header
    %s7 = sphi 0, %s11
    %p8 = scmp.ge.s32.totalorder %s7, 4
    %s14 = sphi 0, %s33
    %s15 = sphi 0, %s29
    %s16 = sphi 0, %s25
    %s17 = sphi 0, %s14
    %s18 = sphi 0, %s15
    %s19 = sphi 0, %s16
    %s20 = sphi 0, %s17
    %s21 = sphi 0, %s18
    %s22 = sphi 0, %s19
    %s40 = sphi 0, %s42
    %s43 = sphi 0, %s40
    %s44 = sphi 0, %s43
    %s60 = sphi 0, %s44
    %s66 = sphi 0, %s68
    %s69 = sphi 0, %s66
    %s70 = sphi 0, %s69
    %s86 = sphi 0, %s70
  $region4: #{mec_forward.3} parent=0 // loop_header_branch
    %10 = sbr.rel (%p8) target = $region8
  $region5: #{mec_forward.3} parent=0 // loop_body
    %s12 = ssub.s32 %s7, 1
    %s13 = ssub.s32 %s7, 2
    %s23 = sadd.s32 1, %s16
    %p24 = scmp.ge.s32.totalorder %s23, 1
    %s25 = scalar_select %p24, 0, %s23
    %s26 = sadd.s32 1, %s15
    %s27 = scalar_select %p24, %s26, %s15
    %p28 = scmp.ge.s32.totalorder %s27, 1
    %s29 = scalar_select %p28, 0, %s27
    %s30 = sadd.s32 1, %s14
    %s31 = scalar_select %p28, %s30, %s14
    %p32 = scmp.ge.s32.totalorder %s31, 2
    %s33 = scalar_select %p32, 0, %s31
    %s34 = ssub.s32 %s14, %s33
    %s35 = ssub.s32 %s15, %s29
    %s36 = sor.u32 %s34, %s35
    %s37 = ssub.s32 %s16, %s25
    %s38 = sor.u32 %s36, %s37
    %p39 = scmp.eq.s32.totalorder %s38, 0
    %s41 = sadd.s32 %s40, 1
    %s42 = scalar_select %p39, %s40, %s41
    %p45 = pneg %p39
    %p46 = scmp.eq.s32.totalorder %s7, 1
    %p47 = por %p45, %p46
    %p48 = scmp.ne.s32.totalorder %s40, %s43
    %p49 = scmp.eq.s32.totalorder %s7, 0
    %p50 = por %p48, %p49
    %p51 = scmp.ne.s32.totalorder %s40, %s43
    %p52 = scmp.eq.s32.totalorder %s12, 1
    %p53 = por %p51, %p52
    %p54 = scmp.ne.s32.totalorder %s43, %s44
    %p55 = scmp.eq.s32.totalorder %s12, 0
    %p56 = por %p54, %p55
    %p57 = scmp.ne.s32.totalorder %s43, %s44
    %p58 = scmp.eq.s32.totalorder %s13, 1
    %p59 = por %p57, %p58
    %p61 = scmp.ne.s32.totalorder %s44, %s60
    %p62 = scmp.eq.s32.totalorder %s13, 0
    %p63 = por %p61, %p62
    %s64 = ssub.s32 %s14, %s33
    %p65 = scmp.eq.s32.totalorder %s64, 0
    %s67 = sadd.s32 %s66, 1
    %s68 = scalar_select %p65, %s66, %s67
    %p71 = pneg %p65
    %p72 = scmp.eq.s32.totalorder %s7, 1
    %p73 = por %p71, %p72
    %p74 = scmp.ne.s32.totalorder %s66, %s69
    %p75 = scmp.eq.s32.totalorder %s7, 0
    %p76 = por %p74, %p75
    %p77 = scmp.ne.s32.totalorder %s66, %s69
    %p78 = scmp.eq.s32.totalorder %s12, 1
    %p79 = por %p77, %p78
    %p80 = scmp.ne.s32.totalorder %s69, %s70
    %p81 = scmp.eq.s32.totalorder %s12, 0
    %p82 = por %p80, %p81
    %p83 = scmp.ne.s32.totalorder %s69, %s70
    %p84 = scmp.eq.s32.totalorder %s13, 1
    %p85 = por %p83, %p84
    %p87 = scmp.ne.s32.totalorder %s70, %s86
    %p88 = scmp.eq.s32.totalorder %s13, 0
    %p89 = por %p87, %p88
    %p90 = scmp.le.s32.totalorder 1, %s7
    %p91 = scmp.lt.s32.totalorder %s7, 3
    %p92 = pnand %p90, %p91
    %p93 = pneg %p92
    // Predicated region
    $region9: #{mec_forward.3} parent=5 // pred_check
      _
    $region10: #{mec_forward.3} parent=5 // pred_check_branch
      %95 = sbr.rel (%p92) target = $region12
    $region11: #{mec_forward.3} parent=5 // pred_region
      %s96 = ssub.s32 %s7, 1
    $region12: #{mec_forward.3} parent=5 // pred_fallthru
      _
    %p97 = scmp.lt.s32.totalorder %s7, 2
    // Predicated region
    $region13: #{mec_forward.3} parent=5 // pred_check
      %p98 = pneg %p97
    $region14: #{mec_forward.3} parent=5 // pred_check_branch
      %100 = sbr.rel (%p98) target = $region16
    $region15: #{mec_forward.3} parent=5 // pred_region
      // Predicated region
      $region17: #{mec_forward.3} parent=15 // pred_check
        %p101 = pneg %p50
      $region18: #{mec_forward.3} parent=15 // pred_check_branch
        %103 = sbr.rel (%p101) target = $region20
      $region19: #{mec_forward.3} parent=15 // pred_region
        %s104 = smul.u32 2, %s15
        %s105 = smul.u32 8, %s16
        %p106 = scmp.lt.s32.totalorder %s14, 1
        %s107 = scalar_select %p106, %s14, 1
        %p108 = scmp.lt.s32.totalorder %s104, 1
        %s109 = scalar_select %p108, %s104, 1
        %p110 = scmp.lt.s32.totalorder %s105, 7
        %s111 = scalar_select %p110, %s105, 7
        %s112 = smul.addr %s109, 8
        %s113 = sadd.s32 %s111, %s112
        %s114 = smul.addr %s107, 16
        %s115 = sadd.s32 %s113, %s114
        %s116 = smul.addr %s115, 4
        %s117 = scalar_lea.vmem %s0, %s116
        %s118 = smul.u32 2, %s15
        %s119 = smul.u32 8, %s16
      $region20: #{mec_forward.3} parent=15 // pred_fallthru
        _
    $region16: #{mec_forward.3} parent=5 // pred_fallthru
      _
    %p120 = scmp.le.s32.totalorder 1, %s7
    %p121 = scmp.lt.s32.totalorder %s7, 3
    %p122 = pnand %p120, %p121
    %p123 = pneg %p122
    // Predicated region
    $region21: #{mec_forward.3} parent=5 // pred_check
      _
    $region22: #{mec_forward.3} parent=5 // pred_check_branch
      %125 = sbr.rel (%p122) target = $region24
    $region23: #{mec_forward.3} parent=5 // pred_region
      %s126 = ssub.s32 %s7, 1
      %s127 = smul.u32 2, %s18
      %s128 = smul.u32 8, %s19
      %p129 = scmp.lt.s32.totalorder %s17, 1
      %s130 = scalar_select %p129, %s17, 1
      %p131 = scmp.lt.s32.totalorder %s127, 1
      %s132 = scalar_select %p131, %s127, 1
      %p133 = scmp.lt.s32.totalorder %s128, 7
      %s134 = scalar_select %p133, %s128, 7
      %s135 = smul.addr %s132, 8
      %s136 = sadd.s32 %s134, %s135
      %s137 = smul.addr %s130, 16
      %s138 = sadd.s32 %s136, %s137
      %s139 = smul.addr %s138, 4
      %s140 = scalar_lea.vmem %s0, %s139
      %p141 = pneg %p56
      %p142 = pneg %p53
      %p143 = pneg %p82
      %p144 = pneg %p79
      %p145 = scmp.lt.s32.totalorder %s17, 1
      %s146 = scalar_select %p145, %s17, 1
      %s147 = smul.addr %s146, 2
      %s148 = scalar_lea.vmem %s1, %s147
      %s149 = smul.u32 2, %s18
      %s150 = smul.u32 8, %s19
      %p151 = scmp.lt.s32.totalorder %s17, 1
      %s152 = scalar_select %p151, %s17, 1
      %p153 = scmp.lt.s32.totalorder %s149, 1
      %s154 = scalar_select %p153, %s149, 1
      %p155 = scmp.lt.s32.totalorder %s150, 7
      %s156 = scalar_select %p155, %s150, 7
      %s157 = smul.addr %s154, 8
      %s158 = sadd.s32 %s156, %s157
      %s159 = smul.addr %s152, 16
      %s160 = sadd.s32 %s158, %s159
      %s161 = smul.addr %s160, 4
      %s162 = scalar_lea.vmem %s0, %s161
      %s163 = smul.u32 2, %s18
      %s164 = smul.u32 8, %s19
      %p165 = scmp.lt.s32.totalorder %s17, 1
      %s166 = scalar_select %p165, %s17, 1
      %s167 = smul.addr %s166, 2
      %s168 = scalar_lea.vmem %s1, %s167
      %p169 = scmp.eq.s32.totalorder %s18, 0
      %p170 = scmp.eq.s32.totalorder %s19, 0
      %p171 = pnand %p169, %p170
      %p172 = pneg %p171
      // Predicated region
      $region25: #{mec_forward.3} parent=23 // pred_check
        _
      $region26: #{mec_forward.3} parent=23 // pred_check_branch
        %174 = sbr.rel (%p171) target = $region28
      $region27: #{mec_forward.3} parent=23 // pred_region
        %175 = vst [vmem:[%s168] sm:$0x3] 0.0
      $region28: #{mec_forward.3} parent=23 // pred_fallthru
        _
      %v176 = vld [vmem:[%s162] sm:$0xf]
      %v177 = vld [vmem:[%s162 + $0x4] sm:$0xf]
      %v178 = vld [vmem:[%s162 + $0x8] sm:$0xf]
      %v179 = vld [vmem:[%s162 + $0xc] sm:$0xf]
      %v180 = vld [vmem:[%s162 + $0x10] sm:$0xf]
      %v181 = vld [vmem:[%s162 + $0x14] sm:$0xf]
      %v182 = vld [vmem:[%s162 + $0x18] sm:$0xf]
      %v183 = vld [vmem:[%s162 + $0x1c] sm:$0xf]
      %v184 = vld [vmem:[%s162 + $0x20] sm:$0xf]
      %v185 = vld [vmem:[%s162 + $0x24] sm:$0xf]
      %v186 = vld [vmem:[%s162 + $0x28] sm:$0xf]
      %v187 = vld [vmem:[%s162 + $0x2c] sm:$0xf]
      %v188 = vld [vmem:[%s162 + $0x30] sm:$0xf]
      %v189 = vld [vmem:[%s162 + $0x34] sm:$0xf]
      %v190 = vld [vmem:[%s162 + $0x38] sm:$0xf]
      %v191 = vld [vmem:[%s162 + $0x3c] sm:$0xf]
      %v192 = vunpack.c.l.bf16 %v176
      %v193 = vunpack.c.l.bf16 %v177
      %v194 = vunpack.c.l.bf16 %v178
      %v195 = vunpack.c.l.bf16 %v179
      %v196 = vunpack.c.l.bf16 %v180
      %v197 = vunpack.c.l.bf16 %v181
      %v198 = vunpack.c.l.bf16 %v182
      %v199 = vunpack.c.l.bf16 %v183
      %v200 = vunpack.c.l.bf16 %v184
      %v201 = vunpack.c.l.bf16 %v185
      %v202 = vunpack.c.l.bf16 %v186
      %v203 = vunpack.c.l.bf16 %v187
      %v204 = vunpack.c.l.bf16 %v188
      %v205 = vunpack.c.l.bf16 %v189
      %v206 = vunpack.c.l.bf16 %v190
      %v207 = vunpack.c.l.bf16 %v191
      %v208 = vadd.f32 %v192, %v193
      %v209 = vadd.f32 %v208, %v194
      %v210 = vadd.f32 %v209, %v195
      %v211 = vadd.f32 %v210, %v196
      %v212 = vadd.f32 %v211, %v197
      %v213 = vadd.f32 %v212, %v198
      %v214 = vadd.f32 %v213, %v199
      %v215 = vadd.f32 %v214, %v200
      %v216 = vadd.f32 %v215, %v201
      %v217 = vadd.f32 %v216, %v202
      %v218 = vadd.f32 %v217, %v203
      %v219 = vadd.f32 %v218, %v204
      %v220 = vadd.f32 %v219, %v205
      %v221 = vadd.f32 %v220, %v206
      %v222 = vadd.f32 %v221, %v207
      %v223 = vrot.slane %v222, 4
      %v224 = vadd.f32 %v222, %v223
      %v225 = vrot.slane %v224, 2
      %v226 = vadd.f32 %v224, %v225
      %v227 = vrot.slane %v226, 1
      %v228 = vadd.f32 %v226, %v227
      %v229 = vmul.f32 %v192, %v192
      %v230 = vmul.f32 %v193, %v193
      %v231 = vmul.f32 %v194, %v194
      %v232 = vmul.f32 %v195, %v195
      %v233 = vmul.f32 %v196, %v196
      %v234 = vmul.f32 %v197, %v197
      %v235 = vmul.f32 %v198, %v198
      %v236 = vmul.f32 %v199, %v199
      %v237 = vmul.f32 %v200, %v200
      %v238 = vmul.f32 %v201, %v201
      %v239 = vmul.f32 %v202, %v202
      %v240 = vmul.f32 %v203, %v203
      %v241 = vmul.f32 %v204, %v204
      %v242 = vmul.f32 %v205, %v205
      %v243 = vmul.f32 %v206, %v206
      %v244 = vmul.f32 %v207, %v207
      %v245 = vadd.f32 %v229, %v230
      %v246 = vadd.f32 %v245, %v231
      %v247 = vadd.f32 %v246, %v232
      %v248 = vadd.f32 %v247, %v233
      %v249 = vadd.f32 %v248, %v234
      %v250 = vadd.f32 %v249, %v235
      %v251 = vadd.f32 %v250, %v236
      %v252 = vadd.f32 %v251, %v237
      %v253 = vadd.f32 %v252, %v238
      %v254 = vadd.f32 %v253, %v239
      %v255 = vadd.f32 %v254, %v240
      %v256 = vadd.f32 %v255, %v241
      %v257 = vadd.f32 %v256, %v242
      %v258 = vadd.f32 %v257, %v243
      %v259 = vadd.f32 %v258, %v244
      %v260 = vrot.slane %v259, 4
      %v261 = vadd.f32 %v259, %v260
      %v262 = vrot.slane %v261, 2
      %v263 = vadd.f32 %v261, %v262
      %v264 = vrot.slane %v263, 1
      %v265 = vadd.f32 %v263, %v264
      %v266 = vld [vmem:[%s168] sm:$0x3]
      %vm267 = vcmask 1040384
      %v268 = vsel %vm267, %v228, %v265
      %v269 = vadd.f32 %v266, %v268
      %270 = vst [vmem:[%s168] sm:$0x3] %v269
      %p271 = scmp.lt.s32.totalorder %s17, 1
      %s272 = scalar_select %p271, %s17, 1
      %s273 = smul.addr %s272, 2
      %s274 = scalar_lea.vmem %s1, %s273
      // Predicated region
      $region29: #{mec_forward.3} parent=23 // pred_check
        %p275 = pneg %p79
      $region30: #{mec_forward.3} parent=23 // pred_check_branch
        %277 = sbr.rel (%p275) target = $region32
      $region31: #{mec_forward.3} parent=23 // pred_region
        _
      $region32: #{mec_forward.3} parent=23 // pred_fallthru
        _
    $region24: #{mec_forward.3} parent=5 // pred_fallthru
      _
    %p278 = scmp.le.s32.totalorder 2, %s7
    // Predicated region
    $region33: #{mec_forward.3} parent=5 // pred_check
      %p279 = pneg %p278
    $region34: #{mec_forward.3} parent=5 // pred_check_branch
      %281 = sbr.rel (%p279) target = $region36
    $region35: #{mec_forward.3} parent=5 // pred_region
      %s282 = ssub.s32 %s7, 2
      // Predicated region
      $region37: #{mec_forward.3} parent=35 // pred_check
        %p283 = pneg %p85
      $region38: #{mec_forward.3} parent=35 // pred_check_branch
        %285 = sbr.rel (%p283) target = $region40
      $region39: #{mec_forward.3} parent=35 // pred_region
        %p286 = scmp.lt.s32.totalorder %s20, 1
        %s287 = scalar_select %p286, %s20, 1
        %s288 = smul.addr %s287, 2
        %s289 = scalar_lea.vmem %s1, %s288
      $region40: #{mec_forward.3} parent=35 // pred_fallthru
        _
    $region36: #{mec_forward.3} parent=5 // pred_fallthru
      _
  $region6: #{mec_forward.3} parent=0 // loop_footer
    %s11 = sadd.s32 1, %s7
  $region7: #{mec_forward.3} parent=0 // loop_footer_branch
    %6 = sbr.rel target = $region3
  $region8: #{mec_forward.3} parent=0 // loop_exit
    _

// kernel: mec_forward.5
$region0: #{mec_forward.5}
  #allocation0 [shape = 'u32[]', space=smem, size = 0x4, offset = 0x4, fixed_abs, tag = 'smem constant byte address 0x4 - core index']
  #allocation1 [shape = 'u32[144,128]{1,0:T(1,128)}', space=vmem, size = 0x12000, scoped, tag = 'internal scratch']
  %s0 = inlined_call_operand.vmem [shape: f32[2,2,128], index: 0, kind: input, shape index: {}]
  %s1 = inlined_call_operand.vmem [shape: bf16[128,128], index: 1, kind: input, shape index: {}]
  %s2 = inlined_call_operand.vmem [shape: bf16[128,128], index: 2, kind: input, shape index: {}]
  %s3 = inlined_call_operand.vmem [shape: bf16[128,128], index: 3, kind: input, shape index: {}]
  %s4 = inlined_call_operand.vmem [shape: f32[1,128], index: 4, kind: input, shape index: {}]
  %s5 = inlined_call_operand.vmem [shape: bf16[128,128], index: 5, kind: input, shape index: {}]
  %s6 = inlined_call_operand.vmem [shape: bf16[128,128], index: 6, kind: input, shape index: {}]
  %s7 = inlined_call_operand.vmem [shape: f32[1,128], index: 7, kind: input, shape index: {}]
  %s8 = inlined_call_operand.vmem [shape: f32[2,2,128], index: 8, kind: output, shape index: {0}]
  %s9 = inlined_call_operand.vmem [shape: f32[2,2,128], index: 9, kind: output, shape index: {1}]
  %10 = xla_tuple %s8, %s9
  %s11 = sld [smem:[#allocation0]]
  $region73: #{mec_forward.5} parent=0
    _
  %s13 = ssub.s32 1, %s11
  %s14 = scalar_select 0, %s13, %s11
  loop: start=0, step=1, limit=4
  $region2: #{mec_forward.5} parent=0 // loop_pre_header
    _
  $region3: #{mec_forward.5} parent=0 // loop_header
    %s16 = sphi 0, %s20
    %p17 = scmp.ge.s32.totalorder %s16, 4
    %s26 = sphi 0, %s28
    %s29 = sphi 0, %s26
    %s30 = sphi 0, %s29
    %s46 = sphi 0, %s30
    %s50 = sphi 0, %s50
    %s52 = sphi 0, %s50
    %s53 = sphi 0, %s52
    %s67 = sphi 0, %s53
    %s71 = sphi 0, %s71
    %s73 = sphi 0, %s71
    %s74 = sphi 0, %s73
    %s88 = sphi 0, %s74
    %s92 = sphi 0, %s92
    %s94 = sphi 0, %s92
    %s95 = sphi 0, %s94
    %s109 = sphi 0, %s95
    %s113 = sphi 0, %s113
    %s115 = sphi 0, %s113
    %s116 = sphi 0, %s115
    %s130 = sphi 0, %s116
    %s134 = sphi 0, %s134
    %s136 = sphi 0, %s134
    %s137 = sphi 0, %s136
    %s151 = sphi 0, %s137
    %s155 = sphi 0, %s155
    %s157 = sphi 0, %s155
    %s158 = sphi 0, %s157
    %s172 = sphi 0, %s158
    %s176 = sphi 0, %s176
    %s178 = sphi 0, %s176
    %s179 = sphi 0, %s178
    %s193 = sphi 0, %s179
    %s199 = sphi 0, %s201
    %s202 = sphi 0, %s199
    %s203 = sphi 0, %s202
    %s219 = sphi 0, %s203
    %s225 = sphi 0, %s227
    %s228 = sphi 0, %s225
    %s229 = sphi 0, %s228
    %s245 = sphi 0, %s229
  $region4: #{mec_forward.5} parent=0 // loop_header_branch
    %19 = sbr.rel (%p17) target = $region8
  $region5: #{mec_forward.5} parent=0 // loop_body
    %s21 = ssub.s32 %s16, 1
    %s22 = ssub.s32 %s16, 2
    %s23 = sadd.s32 %s16, 1
    %s24 = ssub.s32 %s16, %s23
    %p25 = scmp.eq.s32.totalorder %s24, 0
    %s27 = sadd.s32 %s26, 1
    %s28 = scalar_select %p25, %s26, %s27
    %p31 = pneg %p25
    %p32 = scmp.eq.s32.totalorder %s16, 1
    %p33 = por %p31, %p32
    %p34 = scmp.ne.s32.totalorder %s26, %s29
    %p35 = scmp.eq.s32.totalorder %s16, 0
    %p36 = por %p34, %p35
    %p37 = scmp.ne.s32.totalorder %s26, %s29
    %p38 = scmp.eq.s32.totalorder %s21, 1
    %p39 = por %p37, %p38
    %p40 = scmp.ne.s32.totalorder %s29, %s30
    %p41 = scmp.eq.s32.totalorder %s21, 0
    %p42 = por %p40, %p41
    %p43 = scmp.ne.s32.totalorder %s29, %s30
    %p44 = scmp.eq.s32.totalorder %s22, 1
    %p45 = por %p43, %p44
    %p47 = scmp.ne.s32.totalorder %s30, %s46
    %p48 = scmp.eq.s32.totalorder %s22, 0
    %p49 = por %p47, %p48
    %s51 = sadd.s32 %s50, 1
    %p54 = scmp.eq.s32.totalorder %s16, 1
    %p55 = scmp.ne.s32.totalorder %s50, %s52
    %p56 = scmp.eq.s32.totalorder %s16, 0
    %p57 = por %p55, %p56
    %p58 = scmp.ne.s32.totalorder %s50, %s52
    %p59 = scmp.eq.s32.totalorder %s21, 1
    %p60 = por %p58, %p59
    %p61 = scmp.ne.s32.totalorder %s52, %s53
    %p62 = scmp.eq.s32.totalorder %s21, 0
    %p63 = por %p61, %p62
    %p64 = scmp.ne.s32.totalorder %s52, %s53
    %p65 = scmp.eq.s32.totalorder %s22, 1
    %p66 = por %p64, %p65
    %p68 = scmp.ne.s32.totalorder %s53, %s67
    %p69 = scmp.eq.s32.totalorder %s22, 0
    %p70 = por %p68, %p69
    %s72 = sadd.s32 %s71, 1
    %p75 = scmp.eq.s32.totalorder %s16, 1
    %p76 = scmp.ne.s32.totalorder %s71, %s73
    %p77 = scmp.eq.s32.totalorder %s16, 0
    %p78 = por %p76, %p77
    %p79 = scmp.ne.s32.totalorder %s71, %s73
    %p80 = scmp.eq.s32.totalorder %s21, 1
    %p81 = por %p79, %p80
    %p82 = scmp.ne.s32.totalorder %s73, %s74
    %p83 = scmp.eq.s32.totalorder %s21, 0
    %p84 = por %p82, %p83
    %p85 = scmp.ne.s32.totalorder %s73, %s74
    %p86 = scmp.eq.s32.totalorder %s22, 1
    %p87 = por %p85, %p86
    %p89 = scmp.ne.s32.totalorder %s74, %s88
    %p90 = scmp.eq.s32.totalorder %s22, 0
    %p91 = por %p89, %p90
    %s93 = sadd.s32 %s92, 1
    %p96 = scmp.eq.s32.totalorder %s16, 1
    %p97 = scmp.ne.s32.totalorder %s92, %s94
    %p98 = scmp.eq.s32.totalorder %s16, 0
    %p99 = por %p97, %p98
    %p100 = scmp.ne.s32.totalorder %s92, %s94
    %p101 = scmp.eq.s32.totalorder %s21, 1
    %p102 = por %p100, %p101
    %p103 = scmp.ne.s32.totalorder %s94, %s95
    %p104 = scmp.eq.s32.totalorder %s21, 0
    %p105 = por %p103, %p104
    %p106 = scmp.ne.s32.totalorder %s94, %s95
    %p107 = scmp.eq.s32.totalorder %s22, 1
    %p108 = por %p106, %p107
    %p110 = scmp.ne.s32.totalorder %s95, %s109
    %p111 = scmp.eq.s32.totalorder %s22, 0
    %p112 = por %p110, %p111
    %s114 = sadd.s32 %s113, 1
    %p117 = scmp.eq.s32.totalorder %s16, 1
    %p118 = scmp.ne.s32.totalorder %s113, %s115
    %p119 = scmp.eq.s32.totalorder %s16, 0
    %p120 = por %p118, %p119
    %p121 = scmp.ne.s32.totalorder %s113, %s115
    %p122 = scmp.eq.s32.totalorder %s21, 1
    %p123 = por %p121, %p122
    %p124 = scmp.ne.s32.totalorder %s115, %s116
    %p125 = scmp.eq.s32.totalorder %s21, 0
    %p126 = por %p124, %p125
    %p127 = scmp.ne.s32.totalorder %s115, %s116
    %p128 = scmp.eq.s32.totalorder %s22, 1
    %p129 = por %p127, %p128
    %p131 = scmp.ne.s32.totalorder %s116, %s130
    %p132 = scmp.eq.s32.totalorder %s22, 0
    %p133 = por %p131, %p132
    %s135 = sadd.s32 %s134, 1
    %p138 = scmp.eq.s32.totalorder %s16, 1
    %p139 = scmp.ne.s32.totalorder %s134, %s136
    %p140 = scmp.eq.s32.totalorder %s16, 0
    %p141 = por %p139, %p140
    %p142 = scmp.ne.s32.totalorder %s134, %s136
    %p143 = scmp.eq.s32.totalorder %s21, 1
    %p144 = por %p142, %p143
    %p145 = scmp.ne.s32.totalorder %s136, %s137
    %p146 = scmp.eq.s32.totalorder %s21, 0
    %p147 = por %p145, %p146
    %p148 = scmp.ne.s32.totalorder %s136, %s137
    %p149 = scmp.eq.s32.totalorder %s22, 1
    %p150 = por %p148, %p149
    %p152 = scmp.ne.s32.totalorder %s137, %s151
    %p153 = scmp.eq.s32.totalorder %s22, 0
    %p154 = por %p152, %p153
    %s156 = sadd.s32 %s155, 1
    %p159 = scmp.eq.s32.totalorder %s16, 1
    %p160 = scmp.ne.s32.totalorder %s155, %s157
    %p161 = scmp.eq.s32.totalorder %s16, 0
    %p162 = por %p160, %p161
    %p163 = scmp.ne.s32.totalorder %s155, %s157
    %p164 = scmp.eq.s32.totalorder %s21, 1
    %p165 = por %p163, %p164
    %p166 = scmp.ne.s32.totalorder %s157, %s158
    %p167 = scmp.eq.s32.totalorder %s21, 0
    %p168 = por %p166, %p167
    %p169 = scmp.ne.s32.totalorder %s157, %s158
    %p170 = scmp.eq.s32.totalorder %s22, 1
    %p171 = por %p169, %p170
    %p173 = scmp.ne.s32.totalorder %s158, %s172
    %p174 = scmp.eq.s32.totalorder %s22, 0
    %p175 = por %p173, %p174
    %s177 = sadd.s32 %s176, 1
    %p180 = scmp.eq.s32.totalorder %s16, 1
    %p181 = scmp.ne.s32.totalorder %s176, %s178
    %p182 = scmp.eq.s32.totalorder %s16, 0
    %p183 = por %p181, %p182
    %p184 = scmp.ne.s32.totalorder %s176, %s178
    %p185 = scmp.eq.s32.totalorder %s21, 1
    %p186 = por %p184, %p185
    %p187 = scmp.ne.s32.totalorder %s178, %s179
    %p188 = scmp.eq.s32.totalorder %s21, 0
    %p189 = por %p187, %p188
    %p190 = scmp.ne.s32.totalorder %s178, %s179
    %p191 = scmp.eq.s32.totalorder %s22, 1
    %p192 = por %p190, %p191
    %p194 = scmp.ne.s32.totalorder %s179, %s193
    %p195 = scmp.eq.s32.totalorder %s22, 0
    %p196 = por %p194, %p195
    %s197 = ssub.s32 %s16, %s23
    %p198 = scmp.eq.s32.totalorder %s197, 0
    %s200 = sadd.s32 %s199, 1
    %s201 = scalar_select %p198, %s199, %s200
    %p204 = pneg %p198
    %p205 = scmp.eq.s32.totalorder %s16, 1
    %p206 = por %p204, %p205
    %p207 = scmp.ne.s32.totalorder %s199, %s202
    %p208 = scmp.eq.s32.totalorder %s16, 0
    %p209 = por %p207, %p208
    %p210 = scmp.ne.s32.totalorder %s199, %s202
    %p211 = scmp.eq.s32.totalorder %s21, 1
    %p212 = por %p210, %p211
    %p213 = scmp.ne.s32.totalorder %s202, %s203
    %p214 = scmp.eq.s32.totalorder %s21, 0
    %p215 = por %p213, %p214
    %p216 = scmp.ne.s32.totalorder %s202, %s203
    %p217 = scmp.eq.s32.totalorder %s22, 1
    %p218 = por %p216, %p217
    %p220 = scmp.ne.s32.totalorder %s203, %s219
    %p221 = scmp.eq.s32.totalorder %s22, 0
    %p222 = por %p220, %p221
    %s223 = ssub.s32 %s16, %s23
    %p224 = scmp.eq.s32.totalorder %s223, 0
    %s226 = sadd.s32 %s225, 1
    %s227 = scalar_select %p224, %s225, %s226
    %p230 = pneg %p224
    %p231 = scmp.eq.s32.totalorder %s16, 1
    %p232 = por %p230, %p231
    %p233 = scmp.ne.s32.totalorder %s225, %s228
    %p234 = scmp.eq.s32.totalorder %s16, 0
    %p235 = por %p233, %p234
    %p236 = scmp.ne.s32.totalorder %s225, %s228
    %p237 = scmp.eq.s32.totalorder %s21, 1
    %p238 = por %p236, %p237
    %p239 = scmp.ne.s32.totalorder %s228, %s229
    %p240 = scmp.eq.s32.totalorder %s21, 0
    %p241 = por %p239, %p240
    %p242 = scmp.ne.s32.totalorder %s228, %s229
    %p243 = scmp.eq.s32.totalorder %s22, 1
    %p244 = por %p242, %p243
    %p246 = scmp.ne.s32.totalorder %s229, %s245
    %p247 = scmp.eq.s32.totalorder %s22, 0
    %p248 = por %p246, %p247
    %p249 = scmp.le.s32.totalorder 1, %s16
    %p250 = scmp.lt.s32.totalorder %s16, 3
    %p251 = pnand %p249, %p250
    %p252 = pneg %p251
    // Predicated region
    $region9: #{mec_forward.5} parent=5 // pred_check
      _
    $region10: #{mec_forward.5} parent=5 // pred_check_branch
      %254 = sbr.rel (%p251) target = $region12
    $region11: #{mec_forward.5} parent=5 // pred_region
      %s255 = ssub.s32 %s16, 1
      // Predicated region
      $region13: #{mec_forward.5} parent=11 // pred_check
        %p256 = pneg %p63
      $region14: #{mec_forward.5} parent=11 // pred_check_branch
        %258 = sbr.rel (%p256) target = $region16
      $region15: #{mec_forward.5} parent=11 // pred_region
        _
      $region16: #{mec_forward.5} parent=11 // pred_fallthru
        _
      // Predicated region
      $region17: #{mec_forward.5} parent=11 // pred_check
        %p259 = pneg %p84
      $region18: #{mec_forward.5} parent=11 // pred_check_branch
        %261 = sbr.rel (%p259) target = $region20
      $region19: #{mec_forward.5} parent=11 // pred_region
        _
      $region20: #{mec_forward.5} parent=11 // pred_fallthru
        _
      // Predicated region
      $region21: #{mec_forward.5} parent=11 // pred_check
        %p262 = pneg %p105
      $region22: #{mec_forward.5} parent=11 // pred_check_branch
        %264 = sbr.rel (%p262) target = $region24
      $region23: #{mec_forward.5} parent=11 // pred_region
        _
      $region24: #{mec_forward.5} parent=11 // pred_fallthru
        _
      // Predicated region
      $region25: #{mec_forward.5} parent=11 // pred_check
        %p265 = pneg %p126
      $region26: #{mec_forward.5} parent=11 // pred_check_branch
        %267 = sbr.rel (%p265) target = $region28
      $region27: #{mec_forward.5} parent=11 // pred_region
        _
      $region28: #{mec_forward.5} parent=11 // pred_fallthru
        _
      // Predicated region
      $region29: #{mec_forward.5} parent=11 // pred_check
        %p268 = pneg %p147
      $region30: #{mec_forward.5} parent=11 // pred_check_branch
        %270 = sbr.rel (%p268) target = $region32
      $region31: #{mec_forward.5} parent=11 // pred_region
        _
      $region32: #{mec_forward.5} parent=11 // pred_fallthru
        _
      // Predicated region
      $region33: #{mec_forward.5} parent=11 // pred_check
        %p271 = pneg %p168
      $region34: #{mec_forward.5} parent=11 // pred_check_branch
        %273 = sbr.rel (%p271) target = $region36
      $region35: #{mec_forward.5} parent=11 // pred_region
        _
      $region36: #{mec_forward.5} parent=11 // pred_fallthru
        _
      // Predicated region
      $region37: #{mec_forward.5} parent=11 // pred_check
        %p274 = pneg %p189
      $region38: #{mec_forward.5} parent=11 // pred_check_branch
        %276 = sbr.rel (%p274) target = $region40
      $region39: #{mec_forward.5} parent=11 // pred_region
        _
      $region40: #{mec_forward.5} parent=11 // pred_fallthru
        _
    $region12: #{mec_forward.5} parent=5 // pred_fallthru
      _
    %p277 = scmp.lt.s32.totalorder %s16, 2
    // Predicated region
    $region41: #{mec_forward.5} parent=5 // pred_check
      %p278 = pneg %p277
    $region42: #{mec_forward.5} parent=5 // pred_check_branch
      %280 = sbr.rel (%p278) target = $region44
    $region43: #{mec_forward.5} parent=5 // pred_region
      // Predicated region
      $region45: #{mec_forward.5} parent=43 // pred_check
        %p281 = pneg %p36
      $region46: #{mec_forward.5} parent=43 // pred_check_branch
        %283 = sbr.rel (%p281) target = $region48
      $region47: #{mec_forward.5} parent=43 // pred_region
        %p284 = scmp.lt.s32.totalorder %s16, 1
        %s285 = scalar_select %p284, %s16, 1
        %s286 = smul.addr %s285, 2
        %s287 = scalar_lea.vmem %s0, %s286
      $region48: #{mec_forward.5} parent=43 // pred_fallthru
        _
    $region44: #{mec_forward.5} parent=5 // pred_fallthru
      _
    %p288 = scmp.le.s32.totalorder 1, %s16
    %p289 = scmp.lt.s32.totalorder %s16, 3
    %p290 = pnand %p288, %p289
    %p291 = pneg %p290
    // Predicated region
    $region49: #{mec_forward.5} parent=5 // pred_check
      _
    $region50: #{mec_forward.5} parent=5 // pred_check_branch
      %293 = sbr.rel (%p290) target = $region52
    $region51: #{mec_forward.5} parent=5 // pred_region
      %s294 = ssub.s32 %s16, 1
      %p295 = scmp.lt.s32.totalorder %s21, 1
      %s296 = scalar_select %p295, %s21, 1
      %s297 = smul.addr %s296, 2
      %s298 = scalar_lea.vmem %s0, %s297
      %p299 = pneg %p42
      %p300 = pneg %p39
      %p301 = pneg %p63
      %p302 = pneg %p60
      %p303 = pneg %p84
      %p304 = pneg %p81
      %p305 = pneg %p105
      %p306 = pneg %p102
      %p307 = pneg %p126
      %p308 = pneg %p123
      %p309 = pneg %p147
      %p310 = pneg %p144
      %p311 = pneg %p168
      %p312 = pneg %p165
      %p313 = pneg %p189
      %p314 = pneg %p186
      %p315 = pneg %p215
      %p316 = pneg %p212
      %p317 = scmp.lt.s32.totalorder %s21, 1
      %s318 = scalar_select %p317, %s21, 1
      %s319 = smul.addr %s318, 2
      %s320 = scalar_lea.vmem %s8, %s319
      %p321 = pneg %p241
      %p322 = pneg %p238
      %p323 = scmp.lt.s32.totalorder %s21, 1
      %s324 = scalar_select %p323, %s21, 1
      %s325 = smul.addr %s324, 2
      %s326 = scalar_lea.vmem %s9, %s325
      %p327 = scmp.lt.s32.totalorder %s21, 1
      %s328 = scalar_select %p327, %s21, 1
      %s329 = smul.addr %s328, 2
      %s330 = scalar_lea.vmem %s0, %s329
      %p331 = scmp.lt.s32.totalorder %s21, 1
      %s332 = scalar_select %p331, %s21, 1
      %s333 = smul.addr %s332, 2
      %s334 = scalar_lea.vmem %s8, %s333
      %p335 = scmp.lt.s32.totalorder %s21, 1
      %s336 = scalar_select %p335, %s21, 1
      %s337 = smul.addr %s336, 2
      %s338 = scalar_lea.vmem %s9, %s337
      %v340 = vld [vmem:[%s330] sm:$0x3]
      %v341 = vpack.c.bf16 %v340, %v340
      %v342 = vld [vmem:[%s1] sm:$0xf]
      %v343 = vld [vmem:[%s1 + $0x4] sm:$0xf]
      %v344 = vld [vmem:[%s1 + $0x8] sm:$0xf]
      %v345 = vld [vmem:[%s1 + $0xc] sm:$0xf]
      %v346 = vld [vmem:[%s1 + $0x10] sm:$0xf]
      %v347 = vld [vmem:[%s1 + $0x14] sm:$0xf]
      %v348 = vld [vmem:[%s1 + $0x18] sm:$0xf]
      %v349 = vld [vmem:[%s1 + $0x1c] sm:$0xf]
      %v350 = vld [vmem:[%s1 + $0x20] sm:$0xf]
      %v351 = vld [vmem:[%s1 + $0x24] sm:$0xf]
      %v352 = vld [vmem:[%s1 + $0x28] sm:$0xf]
      %v353 = vld [vmem:[%s1 + $0x2c] sm:$0xf]
      %v354 = vld [vmem:[%s1 + $0x30] sm:$0xf]
      %v355 = vld [vmem:[%s1 + $0x34] sm:$0xf]
      %v356 = vld [vmem:[%s1 + $0x38] sm:$0xf]
      %v357 = vld [vmem:[%s1 + $0x3c] sm:$0xf]
      %v374 = vunpack.c.l.b16 %v342
      %v375 = vunpack.c.l.b16 %v343
      %v376 = vunpack.c.l.b16 %v344
      %v377 = vunpack.c.l.b16 %v345
      %v378 = vunpack.c.l.b16 %v346
      %v379 = vunpack.c.l.b16 %v347
      %v380 = vunpack.c.l.b16 %v348
      %v381 = vunpack.c.l.b16 %v349
      %v382 = vunpack.c.l.b16 %v350
      %v383 = vunpack.c.l.b16 %v351
      %v384 = vunpack.c.l.b16 %v352
      %v385 = vunpack.c.l.b16 %v353
      %v386 = vunpack.c.l.b16 %v354
      %v387 = vunpack.c.l.b16 %v355
      %v388 = vunpack.c.l.b16 %v356
      %v389 = vunpack.c.l.b16 %v357
      %v390 = vpack.c.b16 %v375, %v374
      %v391 = vpack.c.b16 %v377, %v376
      %v392 = vpack.c.b16 %v379, %v378
      %v393 = vpack.c.b16 %v381, %v380
      %v394 = vpack.c.b16 %v383, %v382
      %v395 = vpack.c.b16 %v385, %v384
      %v396 = vpack.c.b16 %v387, %v386
      %v397 = vpack.c.b16 %v389, %v388
      %406 = vmatprep.subr.bf16.mxu0 0
      %407 = vmatpush1.bf16.msra.mxu0 %v397
      %408 = vmatprep.subr.bf16.mxu0 0
      %409 = vmatpush1.bf16.msra.mxu0 %v396
      %410 = vmatprep.subr.bf16.mxu0 0
      %411 = vmatpush1.bf16.msra.mxu0 %v395
      %412 = vmatprep.subr.bf16.mxu0 0
      %413 = vmatpush1.bf16.msra.mxu0 %v394
      %414 = vmatprep.subr.bf16.mxu0 0
      %415 = vmatpush1.bf16.msra.mxu0 %v393
      %416 = vmatprep.subr.bf16.mxu0 0
      %417 = vmatpush1.bf16.msra.mxu0 %v392
      %418 = vmatprep.subr.bf16.mxu0 0
      %419 = vmatpush1.bf16.msra.mxu0 %v391
      %420 = vmatprep.subr.bf16.mxu0 0
      %421 = vmatpush1.bf16.msra.mxu0 %v390
      %422 = vmatprep.subr.bf16.mxu0 0
      %423 = vmatpush2.bf16.msra.mxu0 0
      %424 = vmatprep.subr.bf16.mxu0 0
      %425 = vmatpush2.bf16.msra.mxu0 0
      %426 = vmatprep.subr.bf16.mxu0 0
      %427 = vmatpush2.bf16.msra.mxu0 0
      %428 = vmatprep.subr.bf16.mxu0 0
      %429 = vmatpush2.bf16.msra.mxu0 0
      %430 = vmatprep.subr.bf16.mxu0 0
      %431 = vmatpush2.bf16.msra.mxu0 0
      %432 = vmatprep.subr.bf16.mxu0 0
      %433 = vmatpush2.bf16.msra.mxu0 0
      %434 = vmatprep.subr.bf16.mxu0 0
      %435 = vmatpush2.bf16.msra.mxu0 0
      %436 = vmatprep.subr.bf16.mxu0 0
      %437 = vmatpush2.bf16.msra.mxu0 0
      %438 = vmatprep.mubr.bf16.mxu0 0
      %439 = vmatmul.mubr.bf16.gmra.mxu0 %v341
      %v440 = vpop.f32.mrf.mxu0
      %v441 = vadd.f32 0.0, %v440
      %v442 = vpop.f32.mrf.mxu0
      %v443 = vpop.f32.mrf.mxu0
      %v444 = vpop.f32.mrf.mxu0
      %445 = vdwg.mxu0
      %vm446 = vcmask 1041408
      %v447 = vsel %vm446, %v441, 0.0
      %v448 = vrot.slane %v447, 4
      %v449 = vadd.f32 %v447, %v448
      %v450 = vrot.slane %v449, 2
      %v451 = vadd.f32 %v449, %v450
      %v452 = vrot.slane %v451, 1
      %v453 = vadd.f32 %v451, %v452
      %v454 = vrcp.pop 2.0
      %v455 = vmul.f32 %v453, %v454
      %v456 = vsub.f32 %v441, %v455
      %v457 = vmul.f32 %v456, %v456
      %v458 = vsel %vm446, %v457, 0.0
      %v459 = vrot.slane %v458, 4
      %v460 = vadd.f32 %v458, %v459
      %v461 = vrot.slane %v460, 2
      %v462 = vadd.f32 %v460, %v461
      %v463 = vrot.slane %v462, 1
      %v464 = vadd.f32 %v462, %v463
      %v465 = vmul.f32 %v464, %v454
      %v466 = vadd.f32 %v465, 1e-05
      %v467 = vrsqrt.pop %v466
      %v468 = vmul.f32 %v456, %v467
      %v469 = vmax.f32 %v468, 0.0
      %v470 = vpack.c.bf16 %v469, %v469
      %v471 = vld [vmem:[%s2] sm:$0xf]
      %v472 = vld [vmem:[%s2 + $0x4] sm:$0xf]
      %v473 = vld [vmem:[%s2 + $0x8] sm:$0xf]
      %v474 = vld [vmem:[%s2 + $0xc] sm:$0xf]
      %v475 = vld [vmem:[%s2 + $0x10] sm:$0xf]
      %v476 = vld [vmem:[%s2 + $0x14] sm:$0xf]
      %v477 = vld [vmem:[%s2 + $0x18] sm:$0xf]
      %v478 = vld [vmem:[%s2 + $0x1c] sm:$0xf]
      %v479 = vld [vmem:[%s2 + $0x20] sm:$0xf]
      %v480 = vld [vmem:[%s2 + $0x24] sm:$0xf]
      %v481 = vld [vmem:[%s2 + $0x28] sm:$0xf]
      %v482 = vld [vmem:[%s2 + $0x2c] sm:$0xf]
      %v483 = vld [vmem:[%s2 + $0x30] sm:$0xf]
      %v484 = vld [vmem:[%s2 + $0x34] sm:$0xf]
      %v485 = vld [vmem:[%s2 + $0x38] sm:$0xf]
      %v486 = vld [vmem:[%s2 + $0x3c] sm:$0xf]
      %v503 = vunpack.c.l.b16 %v471
      %v504 = vunpack.c.l.b16 %v472
      %v505 = vunpack.c.l.b16 %v473
      %v506 = vunpack.c.l.b16 %v474
      %v507 = vunpack.c.l.b16 %v475
      %v508 = vunpack.c.l.b16 %v476
      %v509 = vunpack.c.l.b16 %v477
      %v510 = vunpack.c.l.b16 %v478
      %v511 = vunpack.c.l.b16 %v479
      %v512 = vunpack.c.l.b16 %v480
      %v513 = vunpack.c.l.b16 %v481
      %v514 = vunpack.c.l.b16 %v482
      %v515 = vunpack.c.l.b16 %v483
      %v516 = vunpack.c.l.b16 %v484
      %v517 = vunpack.c.l.b16 %v485
      %v518 = vunpack.c.l.b16 %v486
      %v519 = vpack.c.b16 %v504, %v503
      %v520 = vpack.c.b16 %v506, %v505
      %v521 = vpack.c.b16 %v508, %v507
      %v522 = vpack.c.b16 %v510, %v509
      %v523 = vpack.c.b16 %v512, %v511
      %v524 = vpack.c.b16 %v514, %v513
      %v525 = vpack.c.b16 %v516, %v515
      %v526 = vpack.c.b16 %v518, %v517
      %535 = vmatprep.subr.bf16.mxu0 0
      %536 = vmatpush1.bf16.msra.mxu0 %v526
      %537 = vmatprep.subr.bf16.mxu0 0
      %538 = vmatpush1.bf16.msra.mxu0 %v525
      %539 = vmatprep.subr.bf16.mxu0 0
      %540 = vmatpush1.bf16.msra.mxu0 %v524
      %541 = vmatprep.subr.bf16.mxu0 0
      %542 = vmatpush1.bf16.msra.mxu0 %v523
      %543 = vmatprep.subr.bf16.mxu0 0
      %544 = vmatpush1.bf16.msra.mxu0 %v522
      %545 = vmatprep.subr.bf16.mxu0 0
      %546 = vmatpush1.bf16.msra.mxu0 %v521
      %547 = vmatprep.subr.bf16.mxu0 0
      %548 = vmatpush1.bf16.msra.mxu0 %v520
      %549 = vmatprep.subr.bf16.mxu0 0
      %550 = vmatpush1.bf16.msra.mxu0 %v519
      %551 = vmatprep.subr.bf16.mxu0 0
      %552 = vmatpush2.bf16.msra.mxu0 0
      %553 = vmatprep.subr.bf16.mxu0 0
      %554 = vmatpush2.bf16.msra.mxu0 0
      %555 = vmatprep.subr.bf16.mxu0 0
      %556 = vmatpush2.bf16.msra.mxu0 0
      %557 = vmatprep.subr.bf16.mxu0 0
      %558 = vmatpush2.bf16.msra.mxu0 0
      %559 = vmatprep.subr.bf16.mxu0 0
      %560 = vmatpush2.bf16.msra.mxu0 0
      %561 = vmatprep.subr.bf16.mxu0 0
      %562 = vmatpush2.bf16.msra.mxu0 0
      %563 = vmatprep.subr.bf16.mxu0 0
      %564 = vmatpush2.bf16.msra.mxu0 0
      %565 = vmatprep.subr.bf16.mxu0 0
      %566 = vmatpush2.bf16.msra.mxu0 0
      %567 = vmatprep.mubr.bf16.mxu0 0
      %568 = vmatmul.mubr.bf16.gmra.mxu0 %v470
      %v569 = vpop.f32.mrf.mxu0
      %v570 = vadd.f32 0.0, %v569
      %v571 = vpop.f32.mrf.mxu0
      %v572 = vpop.f32.mrf.mxu0
      %v573 = vpop.f32.mrf.mxu0
      %574 = vdwg.mxu0
      %v575 = vsel %vm446, %v570, 0.0
      %v576 = vrot.slane %v575, 4
      %v577 = vadd.f32 %v575, %v576
      %v578 = vrot.slane %v577, 2
      %v579 = vadd.f32 %v577, %v578
      %v580 = vrot.slane %v579, 1
      %v581 = vadd.f32 %v579, %v580
      %v582 = vmul.f32 %v581, %v454
      %v583 = vsub.f32 %v570, %v582
      %v584 = vmul.f32 %v583, %v583
      %v585 = vsel %vm446, %v584, 0.0
      %v586 = vrot.slane %v585, 4
      %v587 = vadd.f32 %v585, %v586
      %v588 = vrot.slane %v587, 2
      %v589 = vadd.f32 %v587, %v588
      %v590 = vrot.slane %v589, 1
      %v591 = vadd.f32 %v589, %v590
      %v592 = vmul.f32 %v591, %v454
      %v593 = vadd.f32 %v592, 1e-05
      %v594 = vrsqrt.pop %v593
      %v595 = vmul.f32 %v583, %v594
      %v596 = vmax.f32 %v595, 0.0
      %v597 = vpack.c.bf16 %v596, %v596
      %v598 = vld [vmem:[%s3] sm:$0xf]
      %v599 = vld [vmem:[%s3 + $0x4] sm:$0xf]
      %v600 = vld [vmem:[%s3 + $0x8] sm:$0xf]
      %v601 = vld [vmem:[%s3 + $0xc] sm:$0xf]
      %v602 = vld [vmem:[%s3 + $0x10] sm:$0xf]
      %v603 = vld [vmem:[%s3 + $0x14] sm:$0xf]
      %v604 = vld [vmem:[%s3 + $0x18] sm:$0xf]
      %v605 = vld [vmem:[%s3 + $0x1c] sm:$0xf]
      %v606 = vld [vmem:[%s3 + $0x20] sm:$0xf]
      %v607 = vld [vmem:[%s3 + $0x24] sm:$0xf]
      %v608 = vld [vmem:[%s3 + $0x28] sm:$0xf]
      %v609 = vld [vmem:[%s3 + $0x2c] sm:$0xf]
      %v610 = vld [vmem:[%s3 + $0x30] sm:$0xf]
      %v611 = vld [vmem:[%s3 + $0x34] sm:$0xf]
      %v612 = vld [vmem:[%s3 + $0x38] sm:$0xf]
      %v613 = vld [vmem:[%s3 + $0x3c] sm:$0xf]
      %v614 = vld [vmem:[%s4] sm:$0x1]
      %v616 = vlaneseq
      %v617 = vshrl.u32 %v616, 7
      %v618 = vsub.s32 0, %v617
      %v619 = vrot.slane %v614, %v618
      %v637 = vunpack.c.l.b16 %v598
      %v638 = vunpack.c.l.b16 %v599
      %v639 = vunpack.c.l.b16 %v600
      %v640 = vunpack.c.l.b16 %v601
      %v641 = vunpack.c.l.b16 %v602
      %v642 = vunpack.c.l.b16 %v603
      %v643 = vunpack.c.l.b16 %v604
      %v644 = vunpack.c.l.b16 %v605
      %v645 = vunpack.c.l.b16 %v606
      %v646 = vunpack.c.l.b16 %v607
      %v647 = vunpack.c.l.b16 %v608
      %v648 = vunpack.c.l.b16 %v609
      %v649 = vunpack.c.l.b16 %v610
      %v650 = vunpack.c.l.b16 %v611
      %v651 = vunpack.c.l.b16 %v612
      %v652 = vunpack.c.l.b16 %v613
      %v653 = vpack.c.b16 %v638, %v637
      %v654 = vpack.c.b16 %v640, %v639
      %v655 = vpack.c.b16 %v642, %v641
      %v656 = vpack.c.b16 %v644, %v643
      %v657 = vpack.c.b16 %v646, %v645
      %v658 = vpack.c.b16 %v648, %v647
      %v659 = vpack.c.b16 %v650, %v649
      %v660 = vpack.c.b16 %v652, %v651
      %669 = vmatprep.subr.bf16.mxu0 0
      %670 = vmatpush1.bf16.msra.mxu0 %v660
      %671 = vmatprep.subr.bf16.mxu0 0
      %672 = vmatpush1.bf16.msra.mxu0 %v659
      %673 = vmatprep.subr.bf16.mxu0 0
      %674 = vmatpush1.bf16.msra.mxu0 %v658
      %675 = vmatprep.subr.bf16.mxu0 0
      %676 = vmatpush1.bf16.msra.mxu0 %v657
      %677 = vmatprep.subr.bf16.mxu0 0
      %678 = vmatpush1.bf16.msra.mxu0 %v656
      %679 = vmatprep.subr.bf16.mxu0 0
      %680 = vmatpush1.bf16.msra.mxu0 %v655
      %681 = vmatprep.subr.bf16.mxu0 0
      %682 = vmatpush1.bf16.msra.mxu0 %v654
      %683 = vmatprep.subr.bf16.mxu0 0
      %684 = vmatpush1.bf16.msra.mxu0 %v653
      %685 = vmatprep.subr.bf16.mxu0 0
      %686 = vmatpush2.bf16.msra.mxu0 0
      %687 = vmatprep.subr.bf16.mxu0 0
      %688 = vmatpush2.bf16.msra.mxu0 0
      %689 = vmatprep.subr.bf16.mxu0 0
      %690 = vmatpush2.bf16.msra.mxu0 0
      %691 = vmatprep.subr.bf16.mxu0 0
      %692 = vmatpush2.bf16.msra.mxu0 0
      %693 = vmatprep.subr.bf16.mxu0 0
      %694 = vmatpush2.bf16.msra.mxu0 0
      %695 = vmatprep.subr.bf16.mxu0 0
      %696 = vmatpush2.bf16.msra.mxu0 0
      %697 = vmatprep.subr.bf16.mxu0 0
      %698 = vmatpush2.bf16.msra.mxu0 0
      %699 = vmatprep.subr.bf16.mxu0 0
      %700 = vmatpush2.bf16.msra.mxu0 0
      %701 = vmatprep.mubr.bf16.mxu0 0
      %702 = vmatmul.mubr.bf16.gmra.mxu0 %v597
      %v703 = vpop.f32.mrf.mxu0
      %v704 = vadd.f32 %v619, %v703
      %v705 = vpop.f32.mrf.mxu0
      %v706 = vpop.f32.mrf.mxu0
      %v707 = vpop.f32.mrf.mxu0
      %708 = vdwg.mxu0
      %v709 = vsel %vm446, %v704, 0.0
      %v710 = vrot.slane %v709, 4
      %v711 = vadd.f32 %v709, %v710
      %v712 = vrot.slane %v711, 2
      %v713 = vadd.f32 %v711, %v712
      %v714 = vrot.slane %v713, 1
      %v715 = vadd.f32 %v713, %v714
      %v716 = vmul.f32 %v715, %v454
      %v717 = vsub.f32 %v704, %v716
      %v718 = vmul.f32 %v717, %v717
      %v719 = vsel %vm446, %v718, 0.0
      %v720 = vrot.slane %v719, 4
      %v721 = vadd.f32 %v719, %v720
      %v722 = vrot.slane %v721, 2
      %v723 = vadd.f32 %v721, %v722
      %v724 = vrot.slane %v723, 1
      %v725 = vadd.f32 %v723, %v724
      %v726 = vmul.f32 %v725, %v454
      %v727 = vadd.f32 %v726, 1e-05
      %v728 = vrsqrt.pop %v727
      %v729 = vmul.f32 %v717, %v728
      %730 = vst [vmem:[%s338] sm:$0x3] %v729
      %v731 = vpack.c.bf16 %v729, %v729
      %v732 = vld [vmem:[%s5] sm:$0xf]
      %v733 = vld [vmem:[%s5 + $0x4] sm:$0xf]
      %v734 = vld [vmem:[%s5 + $0x8] sm:$0xf]
      %v735 = vld [vmem:[%s5 + $0xc] sm:$0xf]
      %v736 = vld [vmem:[%s5 + $0x10] sm:$0xf]
      %v737 = vld [vmem:[%s5 + $0x14] sm:$0xf]
      %v738 = vld [vmem:[%s5 + $0x18] sm:$0xf]
      %v739 = vld [vmem:[%s5 + $0x1c] sm:$0xf]
      %v740 = vld [vmem:[%s5 + $0x20] sm:$0xf]
      %v741 = vld [vmem:[%s5 + $0x24] sm:$0xf]
      %v742 = vld [vmem:[%s5 + $0x28] sm:$0xf]
      %v743 = vld [vmem:[%s5 + $0x2c] sm:$0xf]
      %v744 = vld [vmem:[%s5 + $0x30] sm:$0xf]
      %v745 = vld [vmem:[%s5 + $0x34] sm:$0xf]
      %v746 = vld [vmem:[%s5 + $0x38] sm:$0xf]
      %v747 = vld [vmem:[%s5 + $0x3c] sm:$0xf]
      %v764 = vunpack.c.l.b16 %v732
      %v765 = vunpack.c.l.b16 %v733
      %v766 = vunpack.c.l.b16 %v734
      %v767 = vunpack.c.l.b16 %v735
      %v768 = vunpack.c.l.b16 %v736
      %v769 = vunpack.c.l.b16 %v737
      %v770 = vunpack.c.l.b16 %v738
      %v771 = vunpack.c.l.b16 %v739
      %v772 = vunpack.c.l.b16 %v740
      %v773 = vunpack.c.l.b16 %v741
      %v774 = vunpack.c.l.b16 %v742
      %v775 = vunpack.c.l.b16 %v743
      %v776 = vunpack.c.l.b16 %v744
      %v777 = vunpack.c.l.b16 %v745
      %v778 = vunpack.c.l.b16 %v746
      %v779 = vunpack.c.l.b16 %v747
      %v780 = vpack.c.b16 %v765, %v764
      %v781 = vpack.c.b16 %v767, %v766
      %v782 = vpack.c.b16 %v769, %v768
      %v783 = vpack.c.b16 %v771, %v770
      %v784 = vpack.c.b16 %v773, %v772
      %v785 = vpack.c.b16 %v775, %v774
      %v786 = vpack.c.b16 %v777, %v776
      %v787 = vpack.c.b16 %v779, %v778
      %796 = vmatprep.subr.bf16.mxu0 0
      %797 = vmatpush1.bf16.msra.mxu0 %v787
      %798 = vmatprep.subr.bf16.mxu0 0
      %799 = vmatpush1.bf16.msra.mxu0 %v786
      %800 = vmatprep.subr.bf16.mxu0 0
      %801 = vmatpush1.bf16.msra.mxu0 %v785
      %802 = vmatprep.subr.bf16.mxu0 0
      %803 = vmatpush1.bf16.msra.mxu0 %v784
      %804 = vmatprep.subr.bf16.mxu0 0
      %805 = vmatpush1.bf16.msra.mxu0 %v783
      %806 = vmatprep.subr.bf16.mxu0 0
      %807 = vmatpush1.bf16.msra.mxu0 %v782
      %808 = vmatprep.subr.bf16.mxu0 0
      %809 = vmatpush1.bf16.msra.mxu0 %v781
      %810 = vmatprep.subr.bf16.mxu0 0
      %811 = vmatpush1.bf16.msra.mxu0 %v780
      %812 = vmatprep.subr.bf16.mxu0 0
      %813 = vmatpush2.bf16.msra.mxu0 0
      %814 = vmatprep.subr.bf16.mxu0 0
      %815 = vmatpush2.bf16.msra.mxu0 0
      %816 = vmatprep.subr.bf16.mxu0 0
      %817 = vmatpush2.bf16.msra.mxu0 0
      %818 = vmatprep.subr.bf16.mxu0 0
      %819 = vmatpush2.bf16.msra.mxu0 0
      %820 = vmatprep.subr.bf16.mxu0 0
      %821 = vmatpush2.bf16.msra.mxu0 0
      %822 = vmatprep.subr.bf16.mxu0 0
      %823 = vmatpush2.bf16.msra.mxu0 0
      %824 = vmatprep.subr.bf16.mxu0 0
      %825 = vmatpush2.bf16.msra.mxu0 0
      %826 = vmatprep.subr.bf16.mxu0 0
      %827 = vmatpush2.bf16.msra.mxu0 0
      %828 = vmatprep.mubr.bf16.mxu0 0
      %829 = vmatmul.mubr.bf16.gmra.mxu0 %v731
      %v830 = vpop.f32.mrf.mxu0
      %v831 = vadd.f32 0.0, %v830
      %v832 = vpop.f32.mrf.mxu0
      %v833 = vpop.f32.mrf.mxu0
      %v834 = vpop.f32.mrf.mxu0
      %835 = vdwg.mxu0
      %v836 = vsel %vm446, %v831, 0.0
      %v837 = vrot.slane %v836, 4
      %v838 = vadd.f32 %v836, %v837
      %v839 = vrot.slane %v838, 2
      %v840 = vadd.f32 %v838, %v839
      %v841 = vrot.slane %v840, 1
      %v842 = vadd.f32 %v840, %v841
      %v843 = vmul.f32 %v842, %v454
      %v844 = vsub.f32 %v831, %v843
      %v845 = vmul.f32 %v844, %v844
      %v846 = vsel %vm446, %v845, 0.0
      %v847 = vrot.slane %v846, 4
      %v848 = vadd.f32 %v846, %v847
      %v849 = vrot.slane %v848, 2
      %v850 = vadd.f32 %v848, %v849
      %v851 = vrot.slane %v850, 1
      %v852 = vadd.f32 %v850, %v851
      %v853 = vmul.f32 %v852, %v454
      %v854 = vadd.f32 %v853, 1e-05
      %v855 = vrsqrt.pop %v854
      %v856 = vmul.f32 %v844, %v855
      %v857 = vmax.f32 %v856, 0.0
      %v858 = vpack.c.bf16 %v857, %v857
      %v859 = vld [vmem:[%s6] sm:$0xf]
      %v860 = vld [vmem:[%s6 + $0x4] sm:$0xf]
      %v861 = vld [vmem:[%s6 + $0x8] sm:$0xf]
      %v862 = vld [vmem:[%s6 + $0xc] sm:$0xf]
      %v863 = vld [vmem:[%s6 + $0x10] sm:$0xf]
      %v864 = vld [vmem:[%s6 + $0x14] sm:$0xf]
      %v865 = vld [vmem:[%s6 + $0x18] sm:$0xf]
      %v866 = vld [vmem:[%s6 + $0x1c] sm:$0xf]
      %v867 = vld [vmem:[%s6 + $0x20] sm:$0xf]
      %v868 = vld [vmem:[%s6 + $0x24] sm:$0xf]
      %v869 = vld [vmem:[%s6 + $0x28] sm:$0xf]
      %v870 = vld [vmem:[%s6 + $0x2c] sm:$0xf]
      %v871 = vld [vmem:[%s6 + $0x30] sm:$0xf]
      %v872 = vld [vmem:[%s6 + $0x34] sm:$0xf]
      %v873 = vld [vmem:[%s6 + $0x38] sm:$0xf]
      %v874 = vld [vmem:[%s6 + $0x3c] sm:$0xf]
      %v875 = vld [vmem:[%s7] sm:$0x1]
      %v877 = vlaneseq
      %v878 = vshrl.u32 %v877, 7
      %v879 = vsub.s32 0, %v878
      %v880 = vrot.slane %v875, %v879
      %v898 = vunpack.c.l.b16 %v859
      %v899 = vunpack.c.l.b16 %v860
      %v900 = vunpack.c.l.b16 %v861
      %v901 = vunpack.c.l.b16 %v862
      %v902 = vunpack.c.l.b16 %v863
      %v903 = vunpack.c.l.b16 %v864
      %v904 = vunpack.c.l.b16 %v865
      %v905 = vunpack.c.l.b16 %v866
      %v906 = vunpack.c.l.b16 %v867
      %v907 = vunpack.c.l.b16 %v868
      %v908 = vunpack.c.l.b16 %v869
      %v909 = vunpack.c.l.b16 %v870
      %v910 = vunpack.c.l.b16 %v871
      %v911 = vunpack.c.l.b16 %v872
      %v912 = vunpack.c.l.b16 %v873
      %v913 = vunpack.c.l.b16 %v874
      %v914 = vpack.c.b16 %v899, %v898
      %v915 = vpack.c.b16 %v901, %v900
      %v916 = vpack.c.b16 %v903, %v902
      %v917 = vpack.c.b16 %v905, %v904
      %v918 = vpack.c.b16 %v907, %v906
      %v919 = vpack.c.b16 %v909, %v908
      %v920 = vpack.c.b16 %v911, %v910
      %v921 = vpack.c.b16 %v913, %v912
      %930 = vmatprep.subr.bf16.mxu0 0
      %931 = vmatpush1.bf16.msra.mxu0 %v921
      %932 = vmatprep.subr.bf16.mxu0 0
      %933 = vmatpush1.bf16.msra.mxu0 %v920
      %934 = vmatprep.subr.bf16.mxu0 0
      %935 = vmatpush1.bf16.msra.mxu0 %v919
      %936 = vmatprep.subr.bf16.mxu0 0
      %937 = vmatpush1.bf16.msra.mxu0 %v918
      %938 = vmatprep.subr.bf16.mxu0 0
      %939 = vmatpush1.bf16.msra.mxu0 %v917
      %940 = vmatprep.subr.bf16.mxu0 0
      %941 = vmatpush1.bf16.msra.mxu0 %v916
      %942 = vmatprep.subr.bf16.mxu0 0
      %943 = vmatpush1.bf16.msra.mxu0 %v915
      %944 = vmatprep.subr.bf16.mxu0 0
      %945 = vmatpush1.bf16.msra.mxu0 %v914
      %946 = vmatprep.subr.bf16.mxu0 0
      %947 = vmatpush2.bf16.msra.mxu0 0
      %948 = vmatprep.subr.bf16.mxu0 0
      %949 = vmatpush2.bf16.msra.mxu0 0
      %950 = vmatprep.subr.bf16.mxu0 0
      %951 = vmatpush2.bf16.msra.mxu0 0
      %952 = vmatprep.subr.bf16.mxu0 0
      %953 = vmatpush2.bf16.msra.mxu0 0
      %954 = vmatprep.subr.bf16.mxu0 0
      %955 = vmatpush2.bf16.msra.mxu0 0
      %956 = vmatprep.subr.bf16.mxu0 0
      %957 = vmatpush2.bf16.msra.mxu0 0
      %958 = vmatprep.subr.bf16.mxu0 0
      %959 = vmatpush2.bf16.msra.mxu0 0
      %960 = vmatprep.subr.bf16.mxu0 0
      %961 = vmatpush2.bf16.msra.mxu0 0
      %962 = vmatprep.mubr.bf16.mxu0 0
      %963 = vmatmul.mubr.bf16.gmra.mxu0 %v858
      %v964 = vpop.f32.mrf.mxu0
      %v965 = vadd.f32 %v880, %v964
      %v966 = vpop.f32.mrf.mxu0
      %v967 = vpop.f32.mrf.mxu0
      %v968 = vpop.f32.mrf.mxu0
      %969 = vdwg.mxu0
      %970 = vst [vmem:[%s334] sm:$0x3] %v965
      %p971 = scmp.lt.s32.totalorder %s21, 1
      %s972 = scalar_select %p971, %s21, 1
      %s973 = smul.addr %s972, 2
      %s974 = scalar_lea.vmem %s8, %s973
      %p975 = scmp.lt.s32.totalorder %s21, 1
      %s976 = scalar_select %p975, %s21, 1
      %s977 = smul.addr %s976, 2
      %s978 = scalar_lea.vmem %s9, %s977
      // Predicated region
      $region53: #{mec_forward.5} parent=51 // pred_check
        %p979 = pneg %p212
      $region54: #{mec_forward.5} parent=51 // pred_check_branch
        %981 = sbr.rel (%p979) target = $region56
      $region55: #{mec_forward.5} parent=51 // pred_region
        _
      $region56: #{mec_forward.5} parent=51 // pred_fallthru
        _
      // Predicated region
      $region57: #{mec_forward.5} parent=51 // pred_check
        %p982 = pneg %p238
      $region58: #{mec_forward.5} parent=51 // pred_check_branch
        %984 = sbr.rel (%p982) target = $region60
      $region59: #{mec_forward.5} parent=51 // pred_region
        _
      $region60: #{mec_forward.5} parent=51 // pred_fallthru
        _
    $region52: #{mec_forward.5} parent=5 // pred_fallthru
      _
    %p985 = scmp.le.s32.totalorder 2, %s16
    // Predicated region
    $region61: #{mec_forward.5} parent=5 // pred_check
      %p986 = pneg %p985
    $region62: #{mec_forward.5} parent=5 // pred_check_branch
      %988 = sbr.rel (%p986) target = $region64
    $region63: #{mec_forward.5} parent=5 // pred_region
      %s989 = ssub.s32 %s16, 2
      // Predicated region
      $region65: #{mec_forward.5} parent=63 // pred_check
        %p990 = pneg %p218
      $region66: #{mec_forward.5} parent=63 // pred_check_branch
        %992 = sbr.rel (%p990) target = $region68
      $region67: #{mec_forward.5} parent=63 // pred_region
        %p993 = scmp.lt.s32.totalorder %s22, 1
        %s994 = scalar_select %p993, %s22, 1
        %s995 = smul.addr %s994, 2
        %s996 = scalar_lea.vmem %s8, %s995
      $region68: #{mec_forward.5} parent=63 // pred_fallthru
        _
      // Predicated region
      $region69: #{mec_forward.5} parent=63 // pred_check
        %p997 = pneg %p244
      $region70: #{mec_forward.5} parent=63 // pred_check_branch
        %999 = sbr.rel (%p997) target = $region72
      $region71: #{mec_forward.5} parent=63 // pred_region
        %p1000 = scmp.lt.s32.totalorder %s22, 1
        %s1001 = scalar_select %p1000, %s22, 1
        %s1002 = smul.addr %s1001, 2
        %s1003 = scalar_lea.vmem %s9, %s1002
      $region72: #{mec_forward.5} parent=63 // pred_fallthru
        _
    $region64: #{mec_forward.5} parent=5 // pred_fallthru
      _
  $region6: #{mec_forward.5} parent=0 // loop_footer
    %s20 = sadd.s32 1, %s16
  $region7: #{mec_forward.5} parent=0 // loop_footer_branch
    %15 = sbr.rel target = $region3
  $region8: #{mec_forward.5} parent=0 // loop_exit
    _

</llo_original>
